<compile_context>
chip_gen: v6e
topology: v6e:2x2x1
jax: 0.10.0
libtpu: 0.0.40
codegen_flags: <defaults>
</compile_context>

<pallas_src>
import jax
import jax.numpy as jnp
from jax.experimental import pallas as pl
from jax.experimental.pallas import tpu as pltpu

D_IN, D_H1, D_H2 = 2048, 256, 128
LANE = 128


def _round_up(x, m):
    return (x + m - 1) // m * m


def hasher_kernel(x_ref, w1_ref, b1_ref, w2_ref, b2_ref, w3_ref, b3_ref, o_ref):
    # Fused 3-layer MLP per batch tile: bf16 MXU matmuls, f32 accumulation,
    # bias + ReLU on the VPU, tanh on the EUP.
    x = x_ref[...]                                                 # bf16 [T, 2048]
    h1 = jnp.dot(x, w1_ref[...], preferred_element_type=jnp.float32) + b1_ref[...]
    h1 = jnp.maximum(h1, 0.0)
    h2 = jnp.dot(h1.astype(jnp.bfloat16), w2_ref[...],
                 preferred_element_type=jnp.float32) + b2_ref[...]
    h2 = jnp.maximum(h2, 0.0)
    h3 = jnp.dot(h2.astype(jnp.bfloat16), w3_ref[...],
                 preferred_element_type=jnp.float32) + b3_ref[...]
    o_ref[...] = jnp.tanh(h3)                                      # f32 [T, n_pad]


def hasher_forward(x, params, *, batch_tile=256,
                   vmem_limit_bytes=32 * 1024 * 1024):
    """x: [B, 2048] f32/bf16. Returns [B, zsize] f32."""
    w1, b1, w2, b2, w3, b3 = params
    B, d_in = x.shape
    assert d_in == D_IN
    zsize = w3.shape[1]

    # ---- lane-dense output: pad final layer width to a multiple of 128 ----
    n_pad = _round_up(zsize, LANE)
    if n_pad != zsize:
        w3 = jnp.pad(w3, ((0, 0), (0, n_pad - zsize)))
        b3 = jnp.pad(b3, ((0, 0), (0, n_pad - zsize)))

    # ---- bf16 operands for the MXU; biases stay f32 ----
    x_bf = x.astype(jnp.bfloat16)
    w1 = w1.astype(jnp.bfloat16)
    w2 = w2.astype(jnp.bfloat16)
    w3 = w3.astype(jnp.bfloat16)
    b1 = b1.astype(jnp.float32)
    b2 = b2.astype(jnp.float32)
    b3 = b3.astype(jnp.float32)

    # ---- batch tiling: biggest 8-aligned tile <= batch_tile; pad ragged B ----
    tile = min(batch_tile, _round_up(B, 8))
    b_padded = _round_up(B, tile)
    if b_padded != B:
        x_bf = jnp.pad(x_bf, ((0, b_padded - B), (0, 0)))

    grid = (b_padded // tile,)

    def batch_map(i):
        return (i, 0)

    def whole_map(i):
        # Constant block index across the grid -> weights stay resident,
        # no re-DMA per batch tile.
        # TODO(synk): on v7x, pl.Buffered(1) on the weight specs would drop the
        # redundant second weight buffer (~2 MB); left at default for safety.
        return (0, 0)

    out = pl.pallas_call(
        hasher_kernel,
        out_shape=jax.ShapeDtypeStruct((b_padded, n_pad), jnp.float32),
        grid_spec=pltpu.PrefetchScalarGridSpec(
            num_scalar_prefetch=0,
            grid=grid,
            in_specs=[
                pl.BlockSpec((tile, D_IN), batch_map),   # x tile       (bf16)
                pl.BlockSpec(w1.shape, whole_map),       # w1 [2048,256] bf16
                pl.BlockSpec(b1.shape, whole_map),       # b1 [1,256]    f32
                pl.BlockSpec(w2.shape, whole_map),       # w2 [256,128]  bf16
                pl.BlockSpec(b2.shape, whole_map),       # b2 [1,128]    f32
                pl.BlockSpec(w3.shape, whole_map),       # w3 [128,n_pad] bf16
                pl.BlockSpec(b3.shape, whole_map),       # b3 [1,n_pad]  f32
            ],
            out_specs=pl.BlockSpec((tile, n_pad), batch_map),
        ),
        compiler_params=pltpu.CompilerParams(
            dimension_semantics=("parallel",),
            vmem_limit_bytes=vmem_limit_bytes,
        ),
    )(x_bf, w1, b1, w2, b2, w3, b3)

    return out[:B, :zsize]


def init_params(key, zsize):
    # Deterministic init mimicking PyTorch nn.Linear default:
    # U(-1/sqrt(fan_in), 1/sqrt(fan_in)) for both weight and bias.
    # Weights stored as [in, out] (transpose of PyTorch), biases as [1, out].
    def linear(k, fan_in, fan_out):
        kw, kb = jax.random.split(k)
        bound = 1.0 / jnp.sqrt(float(fan_in))
        w = jax.random.uniform(kw, (fan_in, fan_out), jnp.float32, -bound, bound)
        b = jax.random.uniform(kb, (1, fan_out), jnp.float32, -bound, bound)
        return w, b

    k1, k2, k3 = jax.random.split(key, 3)
    w1, b1 = linear(k1, D_IN, D_H1)
    w2, b2 = linear(k2, D_H1, D_H2)
    w3, b3 = linear(k3, D_H2, zsize)
    return (w1, b1, w2, b2, w3, b3)


def hasher_reference_f32(x, params):
    w1, b1, w2, b2, w3, b3 = params
    h = jax.nn.relu(x @ w1 + b1)
    h = jax.nn.relu(h @ w2 + b2)
    return jnp.tanh(h @ w3 + b3)


def hasher_reference_bf16(x, params):
    # Mirrors the kernel's numerics: bf16 operands, f32 accumulation.
    w1, b1, w2, b2, w3, b3 = params
    h = jnp.dot(x.astype(jnp.bfloat16), w1.astype(jnp.bfloat16),
                preferred_element_type=jnp.float32) + b1
    h = jnp.maximum(h, 0.0)
    h = jnp.dot(h.astype(jnp.bfloat16), w2.astype(jnp.bfloat16),
                preferred_element_type=jnp.float32) + b2
    h = jnp.maximum(h, 0.0)
    h = jnp.dot(h.astype(jnp.bfloat16), w3.astype(jnp.bfloat16),
                preferred_element_type=jnp.float32) + b3
    return jnp.tanh(h)


if __name__ == "__main__":
    key = jax.random.PRNGKey(0)
    k_params, k_x1, k_x2 = jax.random.split(key, 3)

    zsize = 64
    params = init_params(k_params, zsize)

    # Small demo batch (single grid step, padded to one 8-aligned tile).
    batch = 8
    x = jax.random.normal(k_x1, (batch, D_IN), jnp.float32)
    out = jax.block_until_ready(hasher_forward(x, params))
    assert out.shape == (batch, zsize)
    assert jnp.allclose(out, hasher_reference_bf16(x, params), atol=2e-3, rtol=2e-3)
    assert jnp.allclose(out, hasher_reference_f32(x, params), atol=5e-2, rtol=5e-2)

    # Ragged batch, multi-step grid (exercises padding + tiling path).
    batch2 = 40
    x2 = jax.random.normal(k_x2, (batch2, D_IN), jnp.float32)
    out2 = jax.block_until_ready(hasher_forward(x2, params, batch_tile=16))
    assert out2.shape == (batch2, zsize)
    assert jnp.allclose(out2, hasher_reference_bf16(x2, params), atol=2e-3, rtol=2e-3)

    print("KERNEL_OK")
</pallas_src>

<mosaic_0001>
module attributes {stable_mosaic.version = 11 : i64} {
  func.func @hasher_kernel(%arg0: i32, %arg1: memref<8x2048xbf16, #tpu.memory_space<vmem>>, %arg2: memref<2048x256xbf16, #tpu.memory_space<vmem>>, %arg3: memref<1x256xf32, #tpu.memory_space<vmem>>, %arg4: memref<256x128xbf16, #tpu.memory_space<vmem>>, %arg5: memref<1x128xf32, #tpu.memory_space<vmem>>, %arg6: memref<128x128xbf16, #tpu.memory_space<vmem>>, %arg7: memref<1x128xf32, #tpu.memory_space<vmem>>, %arg8: memref<8x128xf32, #tpu.memory_space<vmem>>) attributes {dimension_semantics = [#tpu.dimension_semantics<parallel>], iteration_bounds = array<i64: 1>, scalar_prefetch = 0 : i64, scratch_operands = 0 : i64, tpu.core_type = #tpu.core_type<tc>, window_params = [{transform_indices = @transform_0, window_bounds = array<i64: 8, 2048>}, {pipeline_mode = #tpu.pipeline_mode<synchronous>, transform_indices = @transform_1, window_bounds = array<i64: 2048, 256>}, {pipeline_mode = #tpu.pipeline_mode<synchronous>, transform_indices = @transform_2, window_bounds = array<i64: 1, 256>}, {pipeline_mode = #tpu.pipeline_mode<synchronous>, transform_indices = @transform_3, window_bounds = array<i64: 256, 128>}, {pipeline_mode = #tpu.pipeline_mode<synchronous>, transform_indices = @transform_4, window_bounds = array<i64: 1, 128>}, {pipeline_mode = #tpu.pipeline_mode<synchronous>, transform_indices = @transform_5, window_bounds = array<i64: 128, 128>}, {pipeline_mode = #tpu.pipeline_mode<synchronous>, transform_indices = @transform_6, window_bounds = array<i64: 1, 128>}, {transform_indices = @transform_7, window_bounds = array<i64: 8, 128>}]} {
    %c0 = arith.constant 0 : index
    %c0_0 = arith.constant 0 : index
    %0 = vector.load %arg1[%c0, %c0_0] : memref<8x2048xbf16, #tpu.memory_space<vmem>>, vector<8x2048xbf16>
    %c0_1 = arith.constant 0 : index
    %c0_2 = arith.constant 0 : index
    %1 = vector.load %arg2[%c0_1, %c0_2] : memref<2048x256xbf16, #tpu.memory_space<vmem>>, vector<2048x256xbf16>
    %cst = arith.constant dense<0.000000e+00> : vector<8x256xf32>
    %2 = tpu.matmul %0, %1, %cst {dimension_numbers = #tpu.dot_dimension_numbers<[1], [0], [0], [1], [0, 0, 1, 1], [], []>} : vector<8x2048xbf16>, vector<2048x256xbf16>, vector<8x256xf32> -> vector<8x256xf32>
    %c0_3 = arith.constant 0 : index
    %c0_4 = arith.constant 0 : index
    %3 = vector.load %arg3[%c0_3, %c0_4] : memref<1x256xf32, #tpu.memory_space<vmem>>, vector<1x256xf32>
    %4 = vector.broadcast %3 : vector<1x256xf32> to vector<8x256xf32>
    %5 = arith.addf %2, %4 : vector<8x256xf32>
    %cst_5 = arith.constant 0.000000e+00 : f32
    %6 = vector.broadcast %cst_5 : f32 to vector<8x256xf32>
    %7 = arith.maximumf %5, %6 : vector<8x256xf32>
    %8 = arith.truncf %7 : vector<8x256xf32> to vector<8x256xbf16>
    %c0_6 = arith.constant 0 : index
    %c0_7 = arith.constant 0 : index
    %9 = vector.load %arg4[%c0_6, %c0_7] : memref<256x128xbf16, #tpu.memory_space<vmem>>, vector<256x128xbf16>
    %cst_8 = arith.constant dense<0.000000e+00> : vector<8x128xf32>
    %10 = tpu.matmul %8, %9, %cst_8 {dimension_numbers = #tpu.dot_dimension_numbers<[1], [0], [0], [1], [0, 0, 1, 1], [], []>} : vector<8x256xbf16>, vector<256x128xbf16>, vector<8x128xf32> -> vector<8x128xf32>
    %c0_9 = arith.constant 0 : index
    %c0_10 = arith.constant 0 : index
    %11 = vector.load %arg5[%c0_9, %c0_10] : memref<1x128xf32, #tpu.memory_space<vmem>>, vector<1x128xf32>
    %12 = vector.broadcast %11 : vector<1x128xf32> to vector<8x128xf32>
    %13 = arith.addf %10, %12 : vector<8x128xf32>
    %cst_11 = arith.constant 0.000000e+00 : f32
    %14 = vector.broadcast %cst_11 : f32 to vector<8x128xf32>
    %15 = arith.maximumf %13, %14 : vector<8x128xf32>
    %16 = arith.truncf %15 : vector<8x128xf32> to vector<8x128xbf16>
    %c0_12 = arith.constant 0 : index
    %c0_13 = arith.constant 0 : index
    %17 = vector.load %arg6[%c0_12, %c0_13] : memref<128x128xbf16, #tpu.memory_space<vmem>>, vector<128x128xbf16>
    %cst_14 = arith.constant dense<0.000000e+00> : vector<8x128xf32>
    %18 = tpu.matmul %16, %17, %cst_14 {dimension_numbers = #tpu.dot_dimension_numbers<[1], [0], [0], [1], [0, 0, 1, 1], [], []>} : vector<8x128xbf16>, vector<128x128xbf16>, vector<8x128xf32> -> vector<8x128xf32>
    %c0_15 = arith.constant 0 : index
    %c0_16 = arith.constant 0 : index
    %19 = vector.load %arg7[%c0_15, %c0_16] : memref<1x128xf32, #tpu.memory_space<vmem>>, vector<1x128xf32>
    %20 = vector.broadcast %19 : vector<1x128xf32> to vector<8x128xf32>
    %21 = arith.addf %18, %20 : vector<8x128xf32>
    %22 = math.tanh %21 : vector<8x128xf32>
    %c0_17 = arith.constant 0 : index
    %c0_18 = arith.constant 0 : index
    %23 = vector.load %arg8[%c0_17, %c0_18] : memref<8x128xf32, #tpu.memory_space<vmem>>, vector<8x128xf32>
    tpu.vector_store %arg8[%c0_17, %c0_18], %22 {strides = array<i32>} : memref<8x128xf32, #tpu.memory_space<vmem>>, vector<8x128xf32>,
    return
  }
  func.func @transform_0(%arg0: i32) -> (i32, i32) {
    %c0_i32 = arith.constant 0 : i32
    %c0_i32_0 = arith.constant 0 : i32
    return %arg0, %c0_i32 : i32, i32
  }
  func.func @transform_1(%arg0: i32) -> (i32, i32) {
    %c0_i32 = arith.constant 0 : i32
    %c0_i32_0 = arith.constant 0 : i32
    %c0_i32_1 = arith.constant 0 : i32
    return %c0_i32, %c0_i32_0 : i32, i32
  }
  func.func @transform_2(%arg0: i32) -> (i32, i32) {
    %c0_i32 = arith.constant 0 : i32
    %c0_i32_0 = arith.constant 0 : i32
    %c0_i32_1 = arith.constant 0 : i32
    return %c0_i32, %c0_i32_0 : i32, i32
  }
  func.func @transform_3(%arg0: i32) -> (i32, i32) {
    %c0_i32 = arith.constant 0 : i32
    %c0_i32_0 = arith.constant 0 : i32
    %c0_i32_1 = arith.constant 0 : i32
    return %c0_i32, %c0_i32_0 : i32, i32
  }
  func.func @transform_4(%arg0: i32) -> (i32, i32) {
    %c0_i32 = arith.constant 0 : i32
    %c0_i32_0 = arith.constant 0 : i32
    %c0_i32_1 = arith.constant 0 : i32
    return %c0_i32, %c0_i32_0 : i32, i32
  }
  func.func @transform_5(%arg0: i32) -> (i32, i32) {
    %c0_i32 = arith.constant 0 : i32
    %c0_i32_0 = arith.constant 0 : i32
    %c0_i32_1 = arith.constant 0 : i32
    return %c0_i32, %c0_i32_0 : i32, i32
  }
  func.func @transform_6(%arg0: i32) -> (i32, i32) {
    %c0_i32 = arith.constant 0 : i32
    %c0_i32_0 = arith.constant 0 : i32
    %c0_i32_1 = arith.constant 0 : i32
    return %c0_i32, %c0_i32_0 : i32, i32
  }
  func.func @transform_7(%arg0: i32) -> (i32, i32) {
    %c0_i32 = arith.constant 0 : i32
    %c0_i32_0 = arith.constant 0 : i32
    return %arg0, %c0_i32 : i32, i32
  }
}

</mosaic_0001>

<llo_original>
// kernel: tpu_custom_call.1
$region0: #{tpu_custom_call.1}
  #allocation0 [shape = 'u32[]', space=smem, size = 0x4, offset = 0x4, fixed_abs, tag = 'smem constant byte address 0x4 - core index']
  #allocation1 [shape = 'u32[144,128]{1,0:T(1,128)}', space=vmem, size = 0x12000, scoped, tag = 'internal scratch']
  %s0 = inlined_call_operand.hbm [shape: bf16[8,2048], index: 0, kind: input, shape index: {}]
  %s1 = inlined_call_operand.hbm [shape: bf16[2048,256], index: 1, kind: input, shape index: {}]
  %s2 = inlined_call_operand.vmem [shape: f32[1,256], index: 2, kind: input, shape index: {}]
  %s3 = inlined_call_operand.hbm [shape: bf16[256,128], index: 3, kind: input, shape index: {}]
  %s4 = inlined_call_operand.vmem [shape: f32[1,128], index: 4, kind: input, shape index: {}]
  %s5 = inlined_call_operand.hbm [shape: bf16[128,128], index: 5, kind: input, shape index: {}]
  %s6 = inlined_call_operand.vmem [shape: f32[1,128], index: 6, kind: input, shape index: {}]
  %s7 = inlined_call_operand.hbm [shape: f32[8,128], index: 7, kind: output, shape index: {}]
  %s8 = sld [smem:[#allocation0]]
  $region54: #{tpu_custom_call.1} parent=0
    _
  %s10 = ssub.s32 1, %s8
  %s11 = scalar_select 0, %s10, %s8
  $region1: #{tpu_custom_call.1} parent=0
    #allocation2 [shape = 'u8[32768]{0}', space=vmem, size = 0x8000, scoped, tag = 'input window, operand 0, single buffered']
    #allocation3 [shape = 's32[1]{0}', space=sflag, size = 0x4, scoped, tag = 'scoped memory for tpu_custom_call.1']
    #allocation4 [shape = 's32[1]{0}', space=sflag, size = 0x4, scoped, tag = 'scoped memory for tpu_custom_call.1']
    #allocation5 [shape = 'u8[1048576]{0}', space=vmem, size = 0x100000, scoped, tag = 'input window, operand 1, single buffered']
    #allocation6 [shape = 's32[1]{0}', space=sflag, size = 0x4, scoped, tag = 'scoped memory for tpu_custom_call.1']
    #allocation7 [shape = 'u8[65536]{0}', space=vmem, size = 0x10000, scoped, tag = 'input window, operand 3, single buffered']
    #allocation8 [shape = 'u8[32768]{0}', space=vmem, size = 0x8000, scoped, tag = 'input window, operand 5, single buffered']
    #allocation9 [shape = 's32[1]{0}', space=sflag, size = 0x4, scoped, tag = 'scoped memory for tpu_custom_call.1']
    #allocation10 [shape = 'u8[4096]{0}', space=vmem, size = 0x1000, scoped, tag = 'output window, operand 0, single buffered']
    %12 = vsyncpa [#allocation3], 0
    %13 = vsyncpa [#allocation6], 0
    %14 = vsyncpa [#allocation9], 0
    %15 = vsyncpa [#allocation4], 0
    // Predicated region
    $region2: #{tpu_custom_call.1} parent=1 // pred_check
      _
    $region3: #{tpu_custom_call.1} parent=1 // pred_check_branch
      %17 = sbr.rel (0) target = $region5
    $region4: #{tpu_custom_call.1} parent=1 // pred_region
      %s19 = ssub.s32 1024, 1024
      %20 = vsyncadd [#allocation3], %s19
      %s22 = sshll.u32 [#allocation2], 4
      %s23 = int_to_ptr.vmem [resolvable:$true] %s22
      %25 = dma.hbm_to_vmem [thread:$0]  %s0, 1024, %s23, [#allocation3]
    $region5: #{tpu_custom_call.1} parent=1 // pred_fallthru
      _
    // Predicated region
    $region6: #{tpu_custom_call.1} parent=1 // pred_check
      _
    $region7: #{tpu_custom_call.1} parent=1 // pred_check_branch
      %27 = sbr.rel (0) target = $region9
    $region8: #{tpu_custom_call.1} parent=1 // pred_region
      %s29 = ssub.s32 32768, 32768
      %30 = vsyncadd [#allocation6], %s29
      %s31 = sshll.u32 [#allocation5], 4
      %s32 = int_to_ptr.vmem [resolvable:$true] %s31
      %37 = dma.hbm_to_vmem [thread:$0]  %s1, 32768, %s32, [#allocation6], 128, 128, 8
    $region9: #{tpu_custom_call.1} parent=1 // pred_fallthru
      _
    // Predicated region
    $region10: #{tpu_custom_call.1} parent=1 // pred_check
      _
    $region11: #{tpu_custom_call.1} parent=1 // pred_check_branch
      %39 = sbr.rel (0) target = $region13
    $region12: #{tpu_custom_call.1} parent=1 // pred_region
      _
    $region13: #{tpu_custom_call.1} parent=1 // pred_fallthru
      _
    // Predicated region
    $region14: #{tpu_custom_call.1} parent=1 // pred_check
      _
    $region15: #{tpu_custom_call.1} parent=1 // pred_check_branch
      %41 = sbr.rel (0) target = $region17
    $region16: #{tpu_custom_call.1} parent=1 // pred_region
      %s43 = ssub.s32 2048, 2048
      %44 = vsyncadd [#allocation6], %s43
      %s45 = sshll.u32 [#allocation7], 4
      %s46 = int_to_ptr.vmem [resolvable:$true] %s45
      %51 = dma.hbm_to_vmem [thread:$0]  %s3, 2048, %s46, [#allocation6], 64, 64, 4
    $region17: #{tpu_custom_call.1} parent=1 // pred_fallthru
      _
    // Predicated region
    $region18: #{tpu_custom_call.1} parent=1 // pred_check
      _
    $region19: #{tpu_custom_call.1} parent=1 // pred_check_branch
      %53 = sbr.rel (0) target = $region21
    $region20: #{tpu_custom_call.1} parent=1 // pred_region
      _
    $region21: #{tpu_custom_call.1} parent=1 // pred_fallthru
      _
    // Predicated region
    $region22: #{tpu_custom_call.1} parent=1 // pred_check
      _
    $region23: #{tpu_custom_call.1} parent=1 // pred_check_branch
      %55 = sbr.rel (0) target = $region25
    $region24: #{tpu_custom_call.1} parent=1 // pred_region
      %s57 = ssub.s32 1024, 1024
      %58 = vsyncadd [#allocation9], %s57
      %s59 = sshll.u32 [#allocation8], 4
      %s60 = int_to_ptr.vmem [resolvable:$true] %s59
      %65 = dma.hbm_to_vmem [thread:$0]  %s5, 1024, %s60, [#allocation9], 64, 64, 4
    $region25: #{tpu_custom_call.1} parent=1 // pred_fallthru
      _
    // Predicated region
    $region26: #{tpu_custom_call.1} parent=1 // pred_check
      _
    $region27: #{tpu_custom_call.1} parent=1 // pred_check_branch
      %67 = sbr.rel (0) target = $region29
    $region28: #{tpu_custom_call.1} parent=1 // pred_region
      _
    $region29: #{tpu_custom_call.1} parent=1 // pred_fallthru
      _
    // Predicated region
    $region30: #{tpu_custom_call.1} parent=1 // pred_check
      _
    $region31: #{tpu_custom_call.1} parent=1 // pred_check_branch
      %69 = sbr.rel (0) target = $region33
    $region32: #{tpu_custom_call.1} parent=1 // pred_region
      %70 = dma.done [#allocation3], 1024
    $region33: #{tpu_custom_call.1} parent=1 // pred_fallthru
      _
    // Predicated region
    $region34: #{tpu_custom_call.1} parent=1 // pred_check
      _
    $region35: #{tpu_custom_call.1} parent=1 // pred_check_branch
      %72 = sbr.rel (0) target = $region37
    $region36: #{tpu_custom_call.1} parent=1 // pred_region
      %73 = dma.done [#allocation6], 32768
    $region37: #{tpu_custom_call.1} parent=1 // pred_fallthru
      _
    // Predicated region
    $region38: #{tpu_custom_call.1} parent=1 // pred_check
      _
    $region39: #{tpu_custom_call.1} parent=1 // pred_check_branch
      %75 = sbr.rel (0) target = $region41
    $region40: #{tpu_custom_call.1} parent=1 // pred_region
      %76 = dma.done [#allocation6], 2048
    $region41: #{tpu_custom_call.1} parent=1 // pred_fallthru
      _
    // Predicated region
    $region42: #{tpu_custom_call.1} parent=1 // pred_check
      _
    $region43: #{tpu_custom_call.1} parent=1 // pred_check_branch
      %78 = sbr.rel (0) target = $region45
    $region44: #{tpu_custom_call.1} parent=1 // pred_region
      %79 = dma.done [#allocation9], 1024
    $region45: #{tpu_custom_call.1} parent=1 // pred_fallthru
      _
    %v81 = vld [vmem:[#allocation2] sm:$0xff]
    %v82 = vld [vmem:[#allocation2 + $0x8] sm:$0xff]
    %v83 = vld [vmem:[#allocation2 + $0x10] sm:$0xff]
    %v84 = vld [vmem:[#allocation2 + $0x18] sm:$0xff]
    %v85 = vld [vmem:[#allocation2 + $0x20] sm:$0xff]
    %v86 = vld [vmem:[#allocation2 + $0x28] sm:$0xff]
    %v87 = vld [vmem:[#allocation2 + $0x30] sm:$0xff]
    %v88 = vld [vmem:[#allocation2 + $0x38] sm:$0xff]
    %v89 = vld [vmem:[#allocation5] sm:$0xff]
    %v90 = vld [vmem:[#allocation5 + $0x8] sm:$0xff]
    %v91 = vld [vmem:[#allocation5 + $0x10] sm:$0xff]
    %v92 = vld [vmem:[#allocation5 + $0x18] sm:$0xff]
    %v93 = vld [vmem:[#allocation5 + $0x20] sm:$0xff]
    %v94 = vld [vmem:[#allocation5 + $0x28] sm:$0xff]
    %v95 = vld [vmem:[#allocation5 + $0x30] sm:$0xff]
    %v96 = vld [vmem:[#allocation5 + $0x38] sm:$0xff]
    %v97 = vld [vmem:[#allocation5 + $0x40] sm:$0xff]
    %v98 = vld [vmem:[#allocation5 + $0x48] sm:$0xff]
    %v99 = vld [vmem:[#allocation5 + $0x50] sm:$0xff]
    %v100 = vld [vmem:[#allocation5 + $0x58] sm:$0xff]
    %v101 = vld [vmem:[#allocation5 + $0x60] sm:$0xff]
    %v102 = vld [vmem:[#allocation5 + $0x68] sm:$0xff]
    %v103 = vld [vmem:[#allocation5 + $0x70] sm:$0xff]
    %v104 = vld [vmem:[#allocation5 + $0x78] sm:$0xff]
    %v105 = vld [vmem:[#allocation5 + $0x80] sm:$0xff]
    %v106 = vld [vmem:[#allocation5 + $0x88] sm:$0xff]
    %v107 = vld [vmem:[#allocation5 + $0x90] sm:$0xff]
    %v108 = vld [vmem:[#allocation5 + $0x98] sm:$0xff]
    %v109 = vld [vmem:[#allocation5 + $0xa0] sm:$0xff]
    %v110 = vld [vmem:[#allocation5 + $0xa8] sm:$0xff]
    %v111 = vld [vmem:[#allocation5 + $0xb0] sm:$0xff]
    %v112 = vld [vmem:[#allocation5 + $0xb8] sm:$0xff]
    %v113 = vld [vmem:[#allocation5 + $0xc0] sm:$0xff]
    %v114 = vld [vmem:[#allocation5 + $0xc8] sm:$0xff]
    %v115 = vld [vmem:[#allocation5 + $0xd0] sm:$0xff]
    %v116 = vld [vmem:[#allocation5 + $0xd8] sm:$0xff]
    %v117 = vld [vmem:[#allocation5 + $0xe0] sm:$0xff]
    %v118 = vld [vmem:[#allocation5 + $0xe8] sm:$0xff]
    %v119 = vld [vmem:[#allocation5 + $0xf0] sm:$0xff]
    %v120 = vld [vmem:[#allocation5 + $0xf8] sm:$0xff]
    %v121 = vld [vmem:[#allocation5 + $0x100] sm:$0xff]
    %v122 = vld [vmem:[#allocation5 + $0x108] sm:$0xff]
    %v123 = vld [vmem:[#allocation5 + $0x110] sm:$0xff]
    %v124 = vld [vmem:[#allocation5 + $0x118] sm:$0xff]
    %v125 = vld [vmem:[#allocation5 + $0x120] sm:$0xff]
    %v126 = vld [vmem:[#allocation5 + $0x128] sm:$0xff]
    %v127 = vld [vmem:[#allocation5 + $0x130] sm:$0xff]
    %v128 = vld [vmem:[#allocation5 + $0x138] sm:$0xff]
    %v129 = vld [vmem:[#allocation5 + $0x140] sm:$0xff]
    %v130 = vld [vmem:[#allocation5 + $0x148] sm:$0xff]
    %v131 = vld [vmem:[#allocation5 + $0x150] sm:$0xff]
    %v132 = vld [vmem:[#allocation5 + $0x158] sm:$0xff]
    %v133 = vld [vmem:[#allocation5 + $0x160] sm:$0xff]
    %v134 = vld [vmem:[#allocation5 + $0x168] sm:$0xff]
    %v135 = vld [vmem:[#allocation5 + $0x170] sm:$0xff]
    %v136 = vld [vmem:[#allocation5 + $0x178] sm:$0xff]
    %v137 = vld [vmem:[#allocation5 + $0x180] sm:$0xff]
    %v138 = vld [vmem:[#allocation5 + $0x188] sm:$0xff]
    %v139 = vld [vmem:[#allocation5 + $0x190] sm:$0xff]
    %v140 = vld [vmem:[#allocation5 + $0x198] sm:$0xff]
    %v141 = vld [vmem:[#allocation5 + $0x1a0] sm:$0xff]
    %v142 = vld [vmem:[#allocation5 + $0x1a8] sm:$0xff]
    %v143 = vld [vmem:[#allocation5 + $0x1b0] sm:$0xff]
    %v144 = vld [vmem:[#allocation5 + $0x1b8] sm:$0xff]
    %v145 = vld [vmem:[#allocation5 + $0x1c0] sm:$0xff]
    %v146 = vld [vmem:[#allocation5 + $0x1c8] sm:$0xff]
    %v147 = vld [vmem:[#allocation5 + $0x1d0] sm:$0xff]
    %v148 = vld [vmem:[#allocation5 + $0x1d8] sm:$0xff]
    %v149 = vld [vmem:[#allocation5 + $0x1e0] sm:$0xff]
    %v150 = vld [vmem:[#allocation5 + $0x1e8] sm:$0xff]
    %v151 = vld [vmem:[#allocation5 + $0x1f0] sm:$0xff]
    %v152 = vld [vmem:[#allocation5 + $0x1f8] sm:$0xff]
    %v153 = vld [vmem:[#allocation5 + $0x200] sm:$0xff]
    %v154 = vld [vmem:[#allocation5 + $0x208] sm:$0xff]
    %v155 = vld [vmem:[#allocation5 + $0x210] sm:$0xff]
    %v156 = vld [vmem:[#allocation5 + $0x218] sm:$0xff]
    %v157 = vld [vmem:[#allocation5 + $0x220] sm:$0xff]
    %v158 = vld [vmem:[#allocation5 + $0x228] sm:$0xff]
    %v159 = vld [vmem:[#allocation5 + $0x230] sm:$0xff]
    %v160 = vld [vmem:[#allocation5 + $0x238] sm:$0xff]
    %v161 = vld [vmem:[#allocation5 + $0x240] sm:$0xff]
    %v162 = vld [vmem:[#allocation5 + $0x248] sm:$0xff]
    %v163 = vld [vmem:[#allocation5 + $0x250] sm:$0xff]
    %v164 = vld [vmem:[#allocation5 + $0x258] sm:$0xff]
    %v165 = vld [vmem:[#allocation5 + $0x260] sm:$0xff]
    %v166 = vld [vmem:[#allocation5 + $0x268] sm:$0xff]
    %v167 = vld [vmem:[#allocation5 + $0x270] sm:$0xff]
    %v168 = vld [vmem:[#allocation5 + $0x278] sm:$0xff]
    %v169 = vld [vmem:[#allocation5 + $0x280] sm:$0xff]
    %v170 = vld [vmem:[#allocation5 + $0x288] sm:$0xff]
    %v171 = vld [vmem:[#allocation5 + $0x290] sm:$0xff]
    %v172 = vld [vmem:[#allocation5 + $0x298] sm:$0xff]
    %v173 = vld [vmem:[#allocation5 + $0x2a0] sm:$0xff]
    %v174 = vld [vmem:[#allocation5 + $0x2a8] sm:$0xff]
    %v175 = vld [vmem:[#allocation5 + $0x2b0] sm:$0xff]
    %v176 = vld [vmem:[#allocation5 + $0x2b8] sm:$0xff]
    %v177 = vld [vmem:[#allocation5 + $0x2c0] sm:$0xff]
    %v178 = vld [vmem:[#allocation5 + $0x2c8] sm:$0xff]
    %v179 = vld [vmem:[#allocation5 + $0x2d0] sm:$0xff]
    %v180 = vld [vmem:[#allocation5 + $0x2d8] sm:$0xff]
    %v181 = vld [vmem:[#allocation5 + $0x2e0] sm:$0xff]
    %v182 = vld [vmem:[#allocation5 + $0x2e8] sm:$0xff]
    %v183 = vld [vmem:[#allocation5 + $0x2f0] sm:$0xff]
    %v184 = vld [vmem:[#allocation5 + $0x2f8] sm:$0xff]
    %v185 = vld [vmem:[#allocation5 + $0x300] sm:$0xff]
    %v186 = vld [vmem:[#allocation5 + $0x308] sm:$0xff]
    %v187 = vld [vmem:[#allocation5 + $0x310] sm:$0xff]
    %v188 = vld [vmem:[#allocation5 + $0x318] sm:$0xff]
    %v189 = vld [vmem:[#allocation5 + $0x320] sm:$0xff]
    %v190 = vld [vmem:[#allocation5 + $0x328] sm:$0xff]
    %v191 = vld [vmem:[#allocation5 + $0x330] sm:$0xff]
    %v192 = vld [vmem:[#allocation5 + $0x338] sm:$0xff]
    %v193 = vld [vmem:[#allocation5 + $0x340] sm:$0xff]
    %v194 = vld [vmem:[#allocation5 + $0x348] sm:$0xff]
    %v195 = vld [vmem:[#allocation5 + $0x350] sm:$0xff]
    %v196 = vld [vmem:[#allocation5 + $0x358] sm:$0xff]
    %v197 = vld [vmem:[#allocation5 + $0x360] sm:$0xff]
    %v198 = vld [vmem:[#allocation5 + $0x368] sm:$0xff]
    %v199 = vld [vmem:[#allocation5 + $0x370] sm:$0xff]
    %v200 = vld [vmem:[#allocation5 + $0x378] sm:$0xff]
    %v201 = vld [vmem:[#allocation5 + $0x380] sm:$0xff]
    %v202 = vld [vmem:[#allocation5 + $0x388] sm:$0xff]
    %v203 = vld [vmem:[#allocation5 + $0x390] sm:$0xff]
    %v204 = vld [vmem:[#allocation5 + $0x398] sm:$0xff]
    %v205 = vld [vmem:[#allocation5 + $0x3a0] sm:$0xff]
    %v206 = vld [vmem:[#allocation5 + $0x3a8] sm:$0xff]
    %v207 = vld [vmem:[#allocation5 + $0x3b0] sm:$0xff]
    %v208 = vld [vmem:[#allocation5 + $0x3b8] sm:$0xff]
    %v209 = vld [vmem:[#allocation5 + $0x3c0] sm:$0xff]
    %v210 = vld [vmem:[#allocation5 + $0x3c8] sm:$0xff]
    %v211 = vld [vmem:[#allocation5 + $0x3d0] sm:$0xff]
    %v212 = vld [vmem:[#allocation5 + $0x3d8] sm:$0xff]
    %v213 = vld [vmem:[#allocation5 + $0x3e0] sm:$0xff]
    %v214 = vld [vmem:[#allocation5 + $0x3e8] sm:$0xff]
    %v215 = vld [vmem:[#allocation5 + $0x3f0] sm:$0xff]
    %v216 = vld [vmem:[#allocation5 + $0x3f8] sm:$0xff]
    %v217 = vld [vmem:[#allocation5 + $0x400] sm:$0xff]
    %v218 = vld [vmem:[#allocation5 + $0x408] sm:$0xff]
    %v219 = vld [vmem:[#allocation5 + $0x410] sm:$0xff]
    %v220 = vld [vmem:[#allocation5 + $0x418] sm:$0xff]
    %v221 = vld [vmem:[#allocation5 + $0x420] sm:$0xff]
    %v222 = vld [vmem:[#allocation5 + $0x428] sm:$0xff]
    %v223 = vld [vmem:[#allocation5 + $0x430] sm:$0xff]
    %v224 = vld [vmem:[#allocation5 + $0x438] sm:$0xff]
    %v225 = vld [vmem:[#allocation5 + $0x440] sm:$0xff]
    %v226 = vld [vmem:[#allocation5 + $0x448] sm:$0xff]
    %v227 = vld [vmem:[#allocation5 + $0x450] sm:$0xff]
    %v228 = vld [vmem:[#allocation5 + $0x458] sm:$0xff]
    %v229 = vld [vmem:[#allocation5 + $0x460] sm:$0xff]
    %v230 = vld [vmem:[#allocation5 + $0x468] sm:$0xff]
    %v231 = vld [vmem:[#allocation5 + $0x470] sm:$0xff]
    %v232 = vld [vmem:[#allocation5 + $0x478] sm:$0xff]
    %v233 = vld [vmem:[#allocation5 + $0x480] sm:$0xff]
    %v234 = vld [vmem:[#allocation5 + $0x488] sm:$0xff]
    %v235 = vld [vmem:[#allocation5 + $0x490] sm:$0xff]
    %v236 = vld [vmem:[#allocation5 + $0x498] sm:$0xff]
    %v237 = vld [vmem:[#allocation5 + $0x4a0] sm:$0xff]
    %v238 = vld [vmem:[#allocation5 + $0x4a8] sm:$0xff]
    %v239 = vld [vmem:[#allocation5 + $0x4b0] sm:$0xff]
    %v240 = vld [vmem:[#allocation5 + $0x4b8] sm:$0xff]
    %v241 = vld [vmem:[#allocation5 + $0x4c0] sm:$0xff]
    %v242 = vld [vmem:[#allocation5 + $0x4c8] sm:$0xff]
    %v243 = vld [vmem:[#allocation5 + $0x4d0] sm:$0xff]
    %v244 = vld [vmem:[#allocation5 + $0x4d8] sm:$0xff]
    %v245 = vld [vmem:[#allocation5 + $0x4e0] sm:$0xff]
    %v246 = vld [vmem:[#allocation5 + $0x4e8] sm:$0xff]
    %v247 = vld [vmem:[#allocation5 + $0x4f0] sm:$0xff]
    %v248 = vld [vmem:[#allocation5 + $0x4f8] sm:$0xff]
    %v249 = vld [vmem:[#allocation5 + $0x500] sm:$0xff]
    %v250 = vld [vmem:[#allocation5 + $0x508] sm:$0xff]
    %v251 = vld [vmem:[#allocation5 + $0x510] sm:$0xff]
    %v252 = vld [vmem:[#allocation5 + $0x518] sm:$0xff]
    %v253 = vld [vmem:[#allocation5 + $0x520] sm:$0xff]
    %v254 = vld [vmem:[#allocation5 + $0x528] sm:$0xff]
    %v255 = vld [vmem:[#allocation5 + $0x530] sm:$0xff]
    %v256 = vld [vmem:[#allocation5 + $0x538] sm:$0xff]
    %v257 = vld [vmem:[#allocation5 + $0x540] sm:$0xff]
    %v258 = vld [vmem:[#allocation5 + $0x548] sm:$0xff]
    %v259 = vld [vmem:[#allocation5 + $0x550] sm:$0xff]
    %v260 = vld [vmem:[#allocation5 + $0x558] sm:$0xff]
    %v261 = vld [vmem:[#allocation5 + $0x560] sm:$0xff]
    %v262 = vld [vmem:[#allocation5 + $0x568] sm:$0xff]
    %v263 = vld [vmem:[#allocation5 + $0x570] sm:$0xff]
    %v264 = vld [vmem:[#allocation5 + $0x578] sm:$0xff]
    %v265 = vld [vmem:[#allocation5 + $0x580] sm:$0xff]
    %v266 = vld [vmem:[#allocation5 + $0x588] sm:$0xff]
    %v267 = vld [vmem:[#allocation5 + $0x590] sm:$0xff]
    %v268 = vld [vmem:[#allocation5 + $0x598] sm:$0xff]
    %v269 = vld [vmem:[#allocation5 + $0x5a0] sm:$0xff]
    %v270 = vld [vmem:[#allocation5 + $0x5a8] sm:$0xff]
    %v271 = vld [vmem:[#allocation5 + $0x5b0] sm:$0xff]
    %v272 = vld [vmem:[#allocation5 + $0x5b8] sm:$0xff]
    %v273 = vld [vmem:[#allocation5 + $0x5c0] sm:$0xff]
    %v274 = vld [vmem:[#allocation5 + $0x5c8] sm:$0xff]
    %v275 = vld [vmem:[#allocation5 + $0x5d0] sm:$0xff]
    %v276 = vld [vmem:[#allocation5 + $0x5d8] sm:$0xff]
    %v277 = vld [vmem:[#allocation5 + $0x5e0] sm:$0xff]
    %v278 = vld [vmem:[#allocation5 + $0x5e8] sm:$0xff]
    %v279 = vld [vmem:[#allocation5 + $0x5f0] sm:$0xff]
    %v280 = vld [vmem:[#allocation5 + $0x5f8] sm:$0xff]
    %v281 = vld [vmem:[#allocation5 + $0x600] sm:$0xff]
    %v282 = vld [vmem:[#allocation5 + $0x608] sm:$0xff]
    %v283 = vld [vmem:[#allocation5 + $0x610] sm:$0xff]
    %v284 = vld [vmem:[#allocation5 + $0x618] sm:$0xff]
    %v285 = vld [vmem:[#allocation5 + $0x620] sm:$0xff]
    %v286 = vld [vmem:[#allocation5 + $0x628] sm:$0xff]
    %v287 = vld [vmem:[#allocation5 + $0x630] sm:$0xff]
    %v288 = vld [vmem:[#allocation5 + $0x638] sm:$0xff]
    %v289 = vld [vmem:[#allocation5 + $0x640] sm:$0xff]
    %v290 = vld [vmem:[#allocation5 + $0x648] sm:$0xff]
    %v291 = vld [vmem:[#allocation5 + $0x650] sm:$0xff]
    %v292 = vld [vmem:[#allocation5 + $0x658] sm:$0xff]
    %v293 = vld [vmem:[#allocation5 + $0x660] sm:$0xff]
    %v294 = vld [vmem:[#allocation5 + $0x668] sm:$0xff]
    %v295 = vld [vmem:[#allocation5 + $0x670] sm:$0xff]
    %v296 = vld [vmem:[#allocation5 + $0x678] sm:$0xff]
    %v297 = vld [vmem:[#allocation5 + $0x680] sm:$0xff]
    %v298 = vld [vmem:[#allocation5 + $0x688] sm:$0xff]
    %v299 = vld [vmem:[#allocation5 + $0x690] sm:$0xff]
    %v300 = vld [vmem:[#allocation5 + $0x698] sm:$0xff]
    %v301 = vld [vmem:[#allocation5 + $0x6a0] sm:$0xff]
    %v302 = vld [vmem:[#allocation5 + $0x6a8] sm:$0xff]
    %v303 = vld [vmem:[#allocation5 + $0x6b0] sm:$0xff]
    %v304 = vld [vmem:[#allocation5 + $0x6b8] sm:$0xff]
    %v305 = vld [vmem:[#allocation5 + $0x6c0] sm:$0xff]
    %v306 = vld [vmem:[#allocation5 + $0x6c8] sm:$0xff]
    %v307 = vld [vmem:[#allocation5 + $0x6d0] sm:$0xff]
    %v308 = vld [vmem:[#allocation5 + $0x6d8] sm:$0xff]
    %v309 = vld [vmem:[#allocation5 + $0x6e0] sm:$0xff]
    %v310 = vld [vmem:[#allocation5 + $0x6e8] sm:$0xff]
    %v311 = vld [vmem:[#allocation5 + $0x6f0] sm:$0xff]
    %v312 = vld [vmem:[#allocation5 + $0x6f8] sm:$0xff]
    %v313 = vld [vmem:[#allocation5 + $0x700] sm:$0xff]
    %v314 = vld [vmem:[#allocation5 + $0x708] sm:$0xff]
    %v315 = vld [vmem:[#allocation5 + $0x710] sm:$0xff]
    %v316 = vld [vmem:[#allocation5 + $0x718] sm:$0xff]
    %v317 = vld [vmem:[#allocation5 + $0x720] sm:$0xff]
    %v318 = vld [vmem:[#allocation5 + $0x728] sm:$0xff]
    %v319 = vld [vmem:[#allocation5 + $0x730] sm:$0xff]
    %v320 = vld [vmem:[#allocation5 + $0x738] sm:$0xff]
    %v321 = vld [vmem:[#allocation5 + $0x740] sm:$0xff]
    %v322 = vld [vmem:[#allocation5 + $0x748] sm:$0xff]
    %v323 = vld [vmem:[#allocation5 + $0x750] sm:$0xff]
    %v324 = vld [vmem:[#allocation5 + $0x758] sm:$0xff]
    %v325 = vld [vmem:[#allocation5 + $0x760] sm:$0xff]
    %v326 = vld [vmem:[#allocation5 + $0x768] sm:$0xff]
    %v327 = vld [vmem:[#allocation5 + $0x770] sm:$0xff]
    %v328 = vld [vmem:[#allocation5 + $0x778] sm:$0xff]
    %v329 = vld [vmem:[#allocation5 + $0x780] sm:$0xff]
    %v330 = vld [vmem:[#allocation5 + $0x788] sm:$0xff]
    %v331 = vld [vmem:[#allocation5 + $0x790] sm:$0xff]
    %v332 = vld [vmem:[#allocation5 + $0x798] sm:$0xff]
    %v333 = vld [vmem:[#allocation5 + $0x7a0] sm:$0xff]
    %v334 = vld [vmem:[#allocation5 + $0x7a8] sm:$0xff]
    %v335 = vld [vmem:[#allocation5 + $0x7b0] sm:$0xff]
    %v336 = vld [vmem:[#allocation5 + $0x7b8] sm:$0xff]
    %v337 = vld [vmem:[#allocation5 + $0x7c0] sm:$0xff]
    %v338 = vld [vmem:[#allocation5 + $0x7c8] sm:$0xff]
    %v339 = vld [vmem:[#allocation5 + $0x7d0] sm:$0xff]
    %v340 = vld [vmem:[#allocation5 + $0x7d8] sm:$0xff]
    %v341 = vld [vmem:[#allocation5 + $0x7e0] sm:$0xff]
    %v342 = vld [vmem:[#allocation5 + $0x7e8] sm:$0xff]
    %v343 = vld [vmem:[#allocation5 + $0x7f0] sm:$0xff]
    %v344 = vld [vmem:[#allocation5 + $0x7f8] sm:$0xff]
    %v345 = vld [vmem:[%s2] sm:$0x3]
    %v347 = vlaneseq
    %v348 = vshrl.u32 %v347, 7
    %v349 = vsub.s32 0, %v348
    %v350 = vrot.slane %v345, %v349
    %v351 = vlaneseq
    %v352 = vshrl.u32 %v351, 7
    %v353 = vsub.s32 1, %v352
    %v354 = vrot.slane %v345, %v353
    %v365 = vunpack.c.l.b16 %v81
    %v366 = vunpack.c.h.b16 %v81
    %v367 = vunpack.c.l.b16 %v82
    %v368 = vunpack.c.h.b16 %v82
    %v369 = vunpack.c.l.b16 %v83
    %v370 = vunpack.c.h.b16 %v83
    %v371 = vunpack.c.l.b16 %v84
    %v372 = vunpack.c.h.b16 %v84
    %v373 = vunpack.c.l.b16 %v85
    %v374 = vunpack.c.h.b16 %v85
    %v375 = vunpack.c.l.b16 %v86
    %v376 = vunpack.c.h.b16 %v86
    %v377 = vunpack.c.l.b16 %v87
    %v378 = vunpack.c.h.b16 %v87
    %v379 = vunpack.c.l.b16 %v88
    %v380 = vunpack.c.h.b16 %v88
    %v381 = vpack.c.b16 %v365, %v365
    %v382 = vpack.c.b16 %v366, %v366
    %v383 = vpack.c.b16 %v367, %v367
    %v384 = vpack.c.b16 %v368, %v368
    %v385 = vpack.c.b16 %v369, %v369
    %v386 = vpack.c.b16 %v370, %v370
    %v387 = vpack.c.b16 %v371, %v371
    %v388 = vpack.c.b16 %v372, %v372
    %v389 = vpack.c.b16 %v373, %v373
    %v390 = vpack.c.b16 %v374, %v374
    %v391 = vpack.c.b16 %v375, %v375
    %v392 = vpack.c.b16 %v376, %v376
    %v393 = vpack.c.b16 %v377, %v377
    %v394 = vpack.c.b16 %v378, %v378
    %v395 = vpack.c.b16 %v379, %v379
    %v396 = vpack.c.b16 %v380, %v380
    %v669 = vunpack.c.l.b16 %v89
    %v670 = vunpack.c.h.b16 %v89
    %v671 = vunpack.c.l.b16 %v90
    %v672 = vunpack.c.h.b16 %v90
    %v673 = vunpack.c.l.b16 %v91
    %v674 = vunpack.c.h.b16 %v91
    %v675 = vunpack.c.l.b16 %v92
    %v676 = vunpack.c.h.b16 %v92
    %v677 = vunpack.c.l.b16 %v93
    %v678 = vunpack.c.h.b16 %v93
    %v679 = vunpack.c.l.b16 %v94
    %v680 = vunpack.c.h.b16 %v94
    %v681 = vunpack.c.l.b16 %v95
    %v682 = vunpack.c.h.b16 %v95
    %v683 = vunpack.c.l.b16 %v96
    %v684 = vunpack.c.h.b16 %v96
    %v685 = vunpack.c.l.b16 %v97
    %v686 = vunpack.c.h.b16 %v97
    %v687 = vunpack.c.l.b16 %v98
    %v688 = vunpack.c.h.b16 %v98
    %v689 = vunpack.c.l.b16 %v99
    %v690 = vunpack.c.h.b16 %v99
    %v691 = vunpack.c.l.b16 %v100
    %v692 = vunpack.c.h.b16 %v100
    %v693 = vunpack.c.l.b16 %v101
    %v694 = vunpack.c.h.b16 %v101
    %v695 = vunpack.c.l.b16 %v102
    %v696 = vunpack.c.h.b16 %v102
    %v697 = vunpack.c.l.b16 %v103
    %v698 = vunpack.c.h.b16 %v103
    %v699 = vunpack.c.l.b16 %v104
    %v700 = vunpack.c.h.b16 %v104
    %v701 = vunpack.c.l.b16 %v105
    %v702 = vunpack.c.h.b16 %v105
    %v703 = vunpack.c.l.b16 %v106
    %v704 = vunpack.c.h.b16 %v106
    %v705 = vunpack.c.l.b16 %v107
    %v706 = vunpack.c.h.b16 %v107
    %v707 = vunpack.c.l.b16 %v108
    %v708 = vunpack.c.h.b16 %v108
    %v709 = vunpack.c.l.b16 %v109
    %v710 = vunpack.c.h.b16 %v109
    %v711 = vunpack.c.l.b16 %v110
    %v712 = vunpack.c.h.b16 %v110
    %v713 = vunpack.c.l.b16 %v111
    %v714 = vunpack.c.h.b16 %v111
    %v715 = vunpack.c.l.b16 %v112
    %v716 = vunpack.c.h.b16 %v112
    %v717 = vunpack.c.l.b16 %v113
    %v718 = vunpack.c.h.b16 %v113
    %v719 = vunpack.c.l.b16 %v114
    %v720 = vunpack.c.h.b16 %v114
    %v721 = vunpack.c.l.b16 %v115
    %v722 = vunpack.c.h.b16 %v115
    %v723 = vunpack.c.l.b16 %v116
    %v724 = vunpack.c.h.b16 %v116
    %v725 = vunpack.c.l.b16 %v117
    %v726 = vunpack.c.h.b16 %v117
    %v727 = vunpack.c.l.b16 %v118
    %v728 = vunpack.c.h.b16 %v118
    %v729 = vunpack.c.l.b16 %v119
    %v730 = vunpack.c.h.b16 %v119
    %v731 = vunpack.c.l.b16 %v120
    %v732 = vunpack.c.h.b16 %v120
    %v733 = vunpack.c.l.b16 %v121
    %v734 = vunpack.c.h.b16 %v121
    %v735 = vunpack.c.l.b16 %v122
    %v736 = vunpack.c.h.b16 %v122
    %v737 = vunpack.c.l.b16 %v123
    %v738 = vunpack.c.h.b16 %v123
    %v739 = vunpack.c.l.b16 %v124
    %v740 = vunpack.c.h.b16 %v124
    %v741 = vunpack.c.l.b16 %v125
    %v742 = vunpack.c.h.b16 %v125
    %v743 = vunpack.c.l.b16 %v126
    %v744 = vunpack.c.h.b16 %v126
    %v745 = vunpack.c.l.b16 %v127
    %v746 = vunpack.c.h.b16 %v127
    %v747 = vunpack.c.l.b16 %v128
    %v748 = vunpack.c.h.b16 %v128
    %v749 = vunpack.c.l.b16 %v129
    %v750 = vunpack.c.h.b16 %v129
    %v751 = vunpack.c.l.b16 %v130
    %v752 = vunpack.c.h.b16 %v130
    %v753 = vunpack.c.l.b16 %v131
    %v754 = vunpack.c.h.b16 %v131
    %v755 = vunpack.c.l.b16 %v132
    %v756 = vunpack.c.h.b16 %v132
    %v757 = vunpack.c.l.b16 %v133
    %v758 = vunpack.c.h.b16 %v133
    %v759 = vunpack.c.l.b16 %v134
    %v760 = vunpack.c.h.b16 %v134
    %v761 = vunpack.c.l.b16 %v135
    %v762 = vunpack.c.h.b16 %v135
    %v763 = vunpack.c.l.b16 %v136
    %v764 = vunpack.c.h.b16 %v136
    %v765 = vunpack.c.l.b16 %v137
    %v766 = vunpack.c.h.b16 %v137
    %v767 = vunpack.c.l.b16 %v138
    %v768 = vunpack.c.h.b16 %v138
    %v769 = vunpack.c.l.b16 %v139
    %v770 = vunpack.c.h.b16 %v139
    %v771 = vunpack.c.l.b16 %v140
    %v772 = vunpack.c.h.b16 %v140
    %v773 = vunpack.c.l.b16 %v141
    %v774 = vunpack.c.h.b16 %v141
    %v775 = vunpack.c.l.b16 %v142
    %v776 = vunpack.c.h.b16 %v142
    %v777 = vunpack.c.l.b16 %v143
    %v778 = vunpack.c.h.b16 %v143
    %v779 = vunpack.c.l.b16 %v144
    %v780 = vunpack.c.h.b16 %v144
    %v781 = vunpack.c.l.b16 %v145
    %v782 = vunpack.c.h.b16 %v145
    %v783 = vunpack.c.l.b16 %v146
    %v784 = vunpack.c.h.b16 %v146
    %v785 = vunpack.c.l.b16 %v147
    %v786 = vunpack.c.h.b16 %v147
    %v787 = vunpack.c.l.b16 %v148
    %v788 = vunpack.c.h.b16 %v148
    %v789 = vunpack.c.l.b16 %v149
    %v790 = vunpack.c.h.b16 %v149
    %v791 = vunpack.c.l.b16 %v150
    %v792 = vunpack.c.h.b16 %v150
    %v793 = vunpack.c.l.b16 %v151
    %v794 = vunpack.c.h.b16 %v151
    %v795 = vunpack.c.l.b16 %v152
    %v796 = vunpack.c.h.b16 %v152
    %v797 = vunpack.c.l.b16 %v153
    %v798 = vunpack.c.h.b16 %v153
    %v799 = vunpack.c.l.b16 %v154
    %v800 = vunpack.c.h.b16 %v154
    %v801 = vunpack.c.l.b16 %v155
    %v802 = vunpack.c.h.b16 %v155
    %v803 = vunpack.c.l.b16 %v156
    %v804 = vunpack.c.h.b16 %v156
    %v805 = vunpack.c.l.b16 %v157
    %v806 = vunpack.c.h.b16 %v157
    %v807 = vunpack.c.l.b16 %v158
    %v808 = vunpack.c.h.b16 %v158
    %v809 = vunpack.c.l.b16 %v159
    %v810 = vunpack.c.h.b16 %v159
    %v811 = vunpack.c.l.b16 %v160
    %v812 = vunpack.c.h.b16 %v160
    %v813 = vunpack.c.l.b16 %v161
    %v814 = vunpack.c.h.b16 %v161
    %v815 = vunpack.c.l.b16 %v162
    %v816 = vunpack.c.h.b16 %v162
    %v817 = vunpack.c.l.b16 %v163
    %v818 = vunpack.c.h.b16 %v163
    %v819 = vunpack.c.l.b16 %v164
    %v820 = vunpack.c.h.b16 %v164
    %v821 = vunpack.c.l.b16 %v165
    %v822 = vunpack.c.h.b16 %v165
    %v823 = vunpack.c.l.b16 %v166
    %v824 = vunpack.c.h.b16 %v166
    %v825 = vunpack.c.l.b16 %v167
    %v826 = vunpack.c.h.b16 %v167
    %v827 = vunpack.c.l.b16 %v168
    %v828 = vunpack.c.h.b16 %v168
    %v829 = vunpack.c.l.b16 %v169
    %v830 = vunpack.c.h.b16 %v169
    %v831 = vunpack.c.l.b16 %v170
    %v832 = vunpack.c.h.b16 %v170
    %v833 = vunpack.c.l.b16 %v171
    %v834 = vunpack.c.h.b16 %v171
    %v835 = vunpack.c.l.b16 %v172
    %v836 = vunpack.c.h.b16 %v172
    %v837 = vunpack.c.l.b16 %v173
    %v838 = vunpack.c.h.b16 %v173
    %v839 = vunpack.c.l.b16 %v174
    %v840 = vunpack.c.h.b16 %v174
    %v841 = vunpack.c.l.b16 %v175
    %v842 = vunpack.c.h.b16 %v175
    %v843 = vunpack.c.l.b16 %v176
    %v844 = vunpack.c.h.b16 %v176
    %v845 = vunpack.c.l.b16 %v177
    %v846 = vunpack.c.h.b16 %v177
    %v847 = vunpack.c.l.b16 %v178
    %v848 = vunpack.c.h.b16 %v178
    %v849 = vunpack.c.l.b16 %v179
    %v850 = vunpack.c.h.b16 %v179
    %v851 = vunpack.c.l.b16 %v180
    %v852 = vunpack.c.h.b16 %v180
    %v853 = vunpack.c.l.b16 %v181
    %v854 = vunpack.c.h.b16 %v181
    %v855 = vunpack.c.l.b16 %v182
    %v856 = vunpack.c.h.b16 %v182
    %v857 = vunpack.c.l.b16 %v183
    %v858 = vunpack.c.h.b16 %v183
    %v859 = vunpack.c.l.b16 %v184
    %v860 = vunpack.c.h.b16 %v184
    %v861 = vunpack.c.l.b16 %v185
    %v862 = vunpack.c.h.b16 %v185
    %v863 = vunpack.c.l.b16 %v186
    %v864 = vunpack.c.h.b16 %v186
    %v865 = vunpack.c.l.b16 %v187
    %v866 = vunpack.c.h.b16 %v187
    %v867 = vunpack.c.l.b16 %v188
    %v868 = vunpack.c.h.b16 %v188
    %v869 = vunpack.c.l.b16 %v189
    %v870 = vunpack.c.h.b16 %v189
    %v871 = vunpack.c.l.b16 %v190
    %v872 = vunpack.c.h.b16 %v190
    %v873 = vunpack.c.l.b16 %v191
    %v874 = vunpack.c.h.b16 %v191
    %v875 = vunpack.c.l.b16 %v192
    %v876 = vunpack.c.h.b16 %v192
    %v877 = vunpack.c.l.b16 %v193
    %v878 = vunpack.c.h.b16 %v193
    %v879 = vunpack.c.l.b16 %v194
    %v880 = vunpack.c.h.b16 %v194
    %v881 = vunpack.c.l.b16 %v195
    %v882 = vunpack.c.h.b16 %v195
    %v883 = vunpack.c.l.b16 %v196
    %v884 = vunpack.c.h.b16 %v196
    %v885 = vunpack.c.l.b16 %v197
    %v886 = vunpack.c.h.b16 %v197
    %v887 = vunpack.c.l.b16 %v198
    %v888 = vunpack.c.h.b16 %v198
    %v889 = vunpack.c.l.b16 %v199
    %v890 = vunpack.c.h.b16 %v199
    %v891 = vunpack.c.l.b16 %v200
    %v892 = vunpack.c.h.b16 %v200
    %v893 = vunpack.c.l.b16 %v201
    %v894 = vunpack.c.h.b16 %v201
    %v895 = vunpack.c.l.b16 %v202
    %v896 = vunpack.c.h.b16 %v202
    %v897 = vunpack.c.l.b16 %v203
    %v898 = vunpack.c.h.b16 %v203
    %v899 = vunpack.c.l.b16 %v204
    %v900 = vunpack.c.h.b16 %v204
    %v901 = vunpack.c.l.b16 %v205
    %v902 = vunpack.c.h.b16 %v205
    %v903 = vunpack.c.l.b16 %v206
    %v904 = vunpack.c.h.b16 %v206
    %v905 = vunpack.c.l.b16 %v207
    %v906 = vunpack.c.h.b16 %v207
    %v907 = vunpack.c.l.b16 %v208
    %v908 = vunpack.c.h.b16 %v208
    %v909 = vunpack.c.l.b16 %v209
    %v910 = vunpack.c.h.b16 %v209
    %v911 = vunpack.c.l.b16 %v210
    %v912 = vunpack.c.h.b16 %v210
    %v913 = vunpack.c.l.b16 %v211
    %v914 = vunpack.c.h.b16 %v211
    %v915 = vunpack.c.l.b16 %v212
    %v916 = vunpack.c.h.b16 %v212
    %v917 = vunpack.c.l.b16 %v213
    %v918 = vunpack.c.h.b16 %v213
    %v919 = vunpack.c.l.b16 %v214
    %v920 = vunpack.c.h.b16 %v214
    %v921 = vunpack.c.l.b16 %v215
    %v922 = vunpack.c.h.b16 %v215
    %v923 = vunpack.c.l.b16 %v216
    %v924 = vunpack.c.h.b16 %v216
    %v925 = vunpack.c.l.b16 %v217
    %v926 = vunpack.c.h.b16 %v217
    %v927 = vunpack.c.l.b16 %v218
    %v928 = vunpack.c.h.b16 %v218
    %v929 = vunpack.c.l.b16 %v219
    %v930 = vunpack.c.h.b16 %v219
    %v931 = vunpack.c.l.b16 %v220
    %v932 = vunpack.c.h.b16 %v220
    %v933 = vunpack.c.l.b16 %v221
    %v934 = vunpack.c.h.b16 %v221
    %v935 = vunpack.c.l.b16 %v222
    %v936 = vunpack.c.h.b16 %v222
    %v937 = vunpack.c.l.b16 %v223
    %v938 = vunpack.c.h.b16 %v223
    %v939 = vunpack.c.l.b16 %v224
    %v940 = vunpack.c.h.b16 %v224
    %v941 = vunpack.c.l.b16 %v225
    %v942 = vunpack.c.h.b16 %v225
    %v943 = vunpack.c.l.b16 %v226
    %v944 = vunpack.c.h.b16 %v226
    %v945 = vunpack.c.l.b16 %v227
    %v946 = vunpack.c.h.b16 %v227
    %v947 = vunpack.c.l.b16 %v228
    %v948 = vunpack.c.h.b16 %v228
    %v949 = vunpack.c.l.b16 %v229
    %v950 = vunpack.c.h.b16 %v229
    %v951 = vunpack.c.l.b16 %v230
    %v952 = vunpack.c.h.b16 %v230
    %v953 = vunpack.c.l.b16 %v231
    %v954 = vunpack.c.h.b16 %v231
    %v955 = vunpack.c.l.b16 %v232
    %v956 = vunpack.c.h.b16 %v232
    %v957 = vunpack.c.l.b16 %v233
    %v958 = vunpack.c.h.b16 %v233
    %v959 = vunpack.c.l.b16 %v234
    %v960 = vunpack.c.h.b16 %v234
    %v961 = vunpack.c.l.b16 %v235
    %v962 = vunpack.c.h.b16 %v235
    %v963 = vunpack.c.l.b16 %v236
    %v964 = vunpack.c.h.b16 %v236
    %v965 = vunpack.c.l.b16 %v237
    %v966 = vunpack.c.h.b16 %v237
    %v967 = vunpack.c.l.b16 %v238
    %v968 = vunpack.c.h.b16 %v238
    %v969 = vunpack.c.l.b16 %v239
    %v970 = vunpack.c.h.b16 %v239
    %v971 = vunpack.c.l.b16 %v240
    %v972 = vunpack.c.h.b16 %v240
    %v973 = vunpack.c.l.b16 %v241
    %v974 = vunpack.c.h.b16 %v241
    %v975 = vunpack.c.l.b16 %v242
    %v976 = vunpack.c.h.b16 %v242
    %v977 = vunpack.c.l.b16 %v243
    %v978 = vunpack.c.h.b16 %v243
    %v979 = vunpack.c.l.b16 %v244
    %v980 = vunpack.c.h.b16 %v244
    %v981 = vunpack.c.l.b16 %v245
    %v982 = vunpack.c.h.b16 %v245
    %v983 = vunpack.c.l.b16 %v246
    %v984 = vunpack.c.h.b16 %v246
    %v985 = vunpack.c.l.b16 %v247
    %v986 = vunpack.c.h.b16 %v247
    %v987 = vunpack.c.l.b16 %v248
    %v988 = vunpack.c.h.b16 %v248
    %v989 = vunpack.c.l.b16 %v249
    %v990 = vunpack.c.h.b16 %v249
    %v991 = vunpack.c.l.b16 %v250
    %v992 = vunpack.c.h.b16 %v250
    %v993 = vunpack.c.l.b16 %v251
    %v994 = vunpack.c.h.b16 %v251
    %v995 = vunpack.c.l.b16 %v252
    %v996 = vunpack.c.h.b16 %v252
    %v997 = vunpack.c.l.b16 %v253
    %v998 = vunpack.c.h.b16 %v253
    %v999 = vunpack.c.l.b16 %v254
    %v1000 = vunpack.c.h.b16 %v254
    %v1001 = vunpack.c.l.b16 %v255
    %v1002 = vunpack.c.h.b16 %v255
    %v1003 = vunpack.c.l.b16 %v256
    %v1004 = vunpack.c.h.b16 %v256
    %v1005 = vunpack.c.l.b16 %v257
    %v1006 = vunpack.c.h.b16 %v257
    %v1007 = vunpack.c.l.b16 %v258
    %v1008 = vunpack.c.h.b16 %v258
    %v1009 = vunpack.c.l.b16 %v259
    %v1010 = vunpack.c.h.b16 %v259
    %v1011 = vunpack.c.l.b16 %v260
    %v1012 = vunpack.c.h.b16 %v260
    %v1013 = vunpack.c.l.b16 %v261
    %v1014 = vunpack.c.h.b16 %v261
    %v1015 = vunpack.c.l.b16 %v262
    %v1016 = vunpack.c.h.b16 %v262
    %v1017 = vunpack.c.l.b16 %v263
    %v1018 = vunpack.c.h.b16 %v263
    %v1019 = vunpack.c.l.b16 %v264
    %v1020 = vunpack.c.h.b16 %v264
    %v1021 = vunpack.c.l.b16 %v265
    %v1022 = vunpack.c.h.b16 %v265
    %v1023 = vunpack.c.l.b16 %v266
    %v1024 = vunpack.c.h.b16 %v266
    %v1025 = vunpack.c.l.b16 %v267
    %v1026 = vunpack.c.h.b16 %v267
    %v1027 = vunpack.c.l.b16 %v268
    %v1028 = vunpack.c.h.b16 %v268
    %v1029 = vunpack.c.l.b16 %v269
    %v1030 = vunpack.c.h.b16 %v269
    %v1031 = vunpack.c.l.b16 %v270
    %v1032 = vunpack.c.h.b16 %v270
    %v1033 = vunpack.c.l.b16 %v271
    %v1034 = vunpack.c.h.b16 %v271
    %v1035 = vunpack.c.l.b16 %v272
    %v1036 = vunpack.c.h.b16 %v272
    %v1037 = vunpack.c.l.b16 %v273
    %v1038 = vunpack.c.h.b16 %v273
    %v1039 = vunpack.c.l.b16 %v274
    %v1040 = vunpack.c.h.b16 %v274
    %v1041 = vunpack.c.l.b16 %v275
    %v1042 = vunpack.c.h.b16 %v275
    %v1043 = vunpack.c.l.b16 %v276
    %v1044 = vunpack.c.h.b16 %v276
    %v1045 = vunpack.c.l.b16 %v277
    %v1046 = vunpack.c.h.b16 %v277
    %v1047 = vunpack.c.l.b16 %v278
    %v1048 = vunpack.c.h.b16 %v278
    %v1049 = vunpack.c.l.b16 %v279
    %v1050 = vunpack.c.h.b16 %v279
    %v1051 = vunpack.c.l.b16 %v280
    %v1052 = vunpack.c.h.b16 %v280
    %v1053 = vunpack.c.l.b16 %v281
    %v1054 = vunpack.c.h.b16 %v281
    %v1055 = vunpack.c.l.b16 %v282
    %v1056 = vunpack.c.h.b16 %v282
    %v1057 = vunpack.c.l.b16 %v283
    %v1058 = vunpack.c.h.b16 %v283
    %v1059 = vunpack.c.l.b16 %v284
    %v1060 = vunpack.c.h.b16 %v284
    %v1061 = vunpack.c.l.b16 %v285
    %v1062 = vunpack.c.h.b16 %v285
    %v1063 = vunpack.c.l.b16 %v286
    %v1064 = vunpack.c.h.b16 %v286
    %v1065 = vunpack.c.l.b16 %v287
    %v1066 = vunpack.c.h.b16 %v287
    %v1067 = vunpack.c.l.b16 %v288
    %v1068 = vunpack.c.h.b16 %v288
    %v1069 = vunpack.c.l.b16 %v289
    %v1070 = vunpack.c.h.b16 %v289
    %v1071 = vunpack.c.l.b16 %v290
    %v1072 = vunpack.c.h.b16 %v290
    %v1073 = vunpack.c.l.b16 %v291
    %v1074 = vunpack.c.h.b16 %v291
    %v1075 = vunpack.c.l.b16 %v292
    %v1076 = vunpack.c.h.b16 %v292
    %v1077 = vunpack.c.l.b16 %v293
    %v1078 = vunpack.c.h.b16 %v293
    %v1079 = vunpack.c.l.b16 %v294
    %v1080 = vunpack.c.h.b16 %v294
    %v1081 = vunpack.c.l.b16 %v295
    %v1082 = vunpack.c.h.b16 %v295
    %v1083 = vunpack.c.l.b16 %v296
    %v1084 = vunpack.c.h.b16 %v296
    %v1085 = vunpack.c.l.b16 %v297
    %v1086 = vunpack.c.h.b16 %v297
    %v1087 = vunpack.c.l.b16 %v298
    %v1088 = vunpack.c.h.b16 %v298
    %v1089 = vunpack.c.l.b16 %v299
    %v1090 = vunpack.c.h.b16 %v299
    %v1091 = vunpack.c.l.b16 %v300
    %v1092 = vunpack.c.h.b16 %v300
    %v1093 = vunpack.c.l.b16 %v301
    %v1094 = vunpack.c.h.b16 %v301
    %v1095 = vunpack.c.l.b16 %v302
    %v1096 = vunpack.c.h.b16 %v302
    %v1097 = vunpack.c.l.b16 %v303
    %v1098 = vunpack.c.h.b16 %v303
    %v1099 = vunpack.c.l.b16 %v304
    %v1100 = vunpack.c.h.b16 %v304
    %v1101 = vunpack.c.l.b16 %v305
    %v1102 = vunpack.c.h.b16 %v305
    %v1103 = vunpack.c.l.b16 %v306
    %v1104 = vunpack.c.h.b16 %v306
    %v1105 = vunpack.c.l.b16 %v307
    %v1106 = vunpack.c.h.b16 %v307
    %v1107 = vunpack.c.l.b16 %v308
    %v1108 = vunpack.c.h.b16 %v308
    %v1109 = vunpack.c.l.b16 %v309
    %v1110 = vunpack.c.h.b16 %v309
    %v1111 = vunpack.c.l.b16 %v310
    %v1112 = vunpack.c.h.b16 %v310
    %v1113 = vunpack.c.l.b16 %v311
    %v1114 = vunpack.c.h.b16 %v311
    %v1115 = vunpack.c.l.b16 %v312
    %v1116 = vunpack.c.h.b16 %v312
    %v1117 = vunpack.c.l.b16 %v313
    %v1118 = vunpack.c.h.b16 %v313
    %v1119 = vunpack.c.l.b16 %v314
    %v1120 = vunpack.c.h.b16 %v314
    %v1121 = vunpack.c.l.b16 %v315
    %v1122 = vunpack.c.h.b16 %v315
    %v1123 = vunpack.c.l.b16 %v316
    %v1124 = vunpack.c.h.b16 %v316
    %v1125 = vunpack.c.l.b16 %v317
    %v1126 = vunpack.c.h.b16 %v317
    %v1127 = vunpack.c.l.b16 %v318
    %v1128 = vunpack.c.h.b16 %v318
    %v1129 = vunpack.c.l.b16 %v319
    %v1130 = vunpack.c.h.b16 %v319
    %v1131 = vunpack.c.l.b16 %v320
    %v1132 = vunpack.c.h.b16 %v320
    %v1133 = vunpack.c.l.b16 %v321
    %v1134 = vunpack.c.h.b16 %v321
    %v1135 = vunpack.c.l.b16 %v322
    %v1136 = vunpack.c.h.b16 %v322
    %v1137 = vunpack.c.l.b16 %v323
    %v1138 = vunpack.c.h.b16 %v323
    %v1139 = vunpack.c.l.b16 %v324
    %v1140 = vunpack.c.h.b16 %v324
    %v1141 = vunpack.c.l.b16 %v325
    %v1142 = vunpack.c.h.b16 %v325
    %v1143 = vunpack.c.l.b16 %v326
    %v1144 = vunpack.c.h.b16 %v326
    %v1145 = vunpack.c.l.b16 %v327
    %v1146 = vunpack.c.h.b16 %v327
    %v1147 = vunpack.c.l.b16 %v328
    %v1148 = vunpack.c.h.b16 %v328
    %v1149 = vunpack.c.l.b16 %v329
    %v1150 = vunpack.c.h.b16 %v329
    %v1151 = vunpack.c.l.b16 %v330
    %v1152 = vunpack.c.h.b16 %v330
    %v1153 = vunpack.c.l.b16 %v331
    %v1154 = vunpack.c.h.b16 %v331
    %v1155 = vunpack.c.l.b16 %v332
    %v1156 = vunpack.c.h.b16 %v332
    %v1157 = vunpack.c.l.b16 %v333
    %v1158 = vunpack.c.h.b16 %v333
    %v1159 = vunpack.c.l.b16 %v334
    %v1160 = vunpack.c.h.b16 %v334
    %v1161 = vunpack.c.l.b16 %v335
    %v1162 = vunpack.c.h.b16 %v335
    %v1163 = vunpack.c.l.b16 %v336
    %v1164 = vunpack.c.h.b16 %v336
    %v1165 = vunpack.c.l.b16 %v337
    %v1166 = vunpack.c.h.b16 %v337
    %v1167 = vunpack.c.l.b16 %v338
    %v1168 = vunpack.c.h.b16 %v338
    %v1169 = vunpack.c.l.b16 %v339
    %v1170 = vunpack.c.h.b16 %v339
    %v1171 = vunpack.c.l.b16 %v340
    %v1172 = vunpack.c.h.b16 %v340
    %v1173 = vunpack.c.l.b16 %v341
    %v1174 = vunpack.c.h.b16 %v341
    %v1175 = vunpack.c.l.b16 %v342
    %v1176 = vunpack.c.h.b16 %v342
    %v1177 = vunpack.c.l.b16 %v343
    %v1178 = vunpack.c.h.b16 %v343
    %v1179 = vunpack.c.l.b16 %v344
    %v1180 = vunpack.c.h.b16 %v344
    %v1181 = vpack.c.b16 %v671, %v669
    %v1182 = vpack.c.b16 %v672, %v670
    %v1183 = vpack.c.b16 %v675, %v673
    %v1184 = vpack.c.b16 %v676, %v674
    %v1185 = vpack.c.b16 %v679, %v677
    %v1186 = vpack.c.b16 %v680, %v678
    %v1187 = vpack.c.b16 %v683, %v681
    %v1188 = vpack.c.b16 %v684, %v682
    %v1189 = vpack.c.b16 %v687, %v685
    %v1190 = vpack.c.b16 %v688, %v686
    %v1191 = vpack.c.b16 %v691, %v689
    %v1192 = vpack.c.b16 %v692, %v690
    %v1193 = vpack.c.b16 %v695, %v693
    %v1194 = vpack.c.b16 %v696, %v694
    %v1195 = vpack.c.b16 %v699, %v697
    %v1196 = vpack.c.b16 %v700, %v698
    %v1197 = vpack.c.b16 %v703, %v701
    %v1198 = vpack.c.b16 %v704, %v702
    %v1199 = vpack.c.b16 %v707, %v705
    %v1200 = vpack.c.b16 %v708, %v706
    %v1201 = vpack.c.b16 %v711, %v709
    %v1202 = vpack.c.b16 %v712, %v710
    %v1203 = vpack.c.b16 %v715, %v713
    %v1204 = vpack.c.b16 %v716, %v714
    %v1205 = vpack.c.b16 %v719, %v717
    %v1206 = vpack.c.b16 %v720, %v718
    %v1207 = vpack.c.b16 %v723, %v721
    %v1208 = vpack.c.b16 %v724, %v722
    %v1209 = vpack.c.b16 %v727, %v725
    %v1210 = vpack.c.b16 %v728, %v726
    %v1211 = vpack.c.b16 %v731, %v729
    %v1212 = vpack.c.b16 %v732, %v730
    %v1213 = vpack.c.b16 %v735, %v733
    %v1214 = vpack.c.b16 %v736, %v734
    %v1215 = vpack.c.b16 %v739, %v737
    %v1216 = vpack.c.b16 %v740, %v738
    %v1217 = vpack.c.b16 %v743, %v741
    %v1218 = vpack.c.b16 %v744, %v742
    %v1219 = vpack.c.b16 %v747, %v745
    %v1220 = vpack.c.b16 %v748, %v746
    %v1221 = vpack.c.b16 %v751, %v749
    %v1222 = vpack.c.b16 %v752, %v750
    %v1223 = vpack.c.b16 %v755, %v753
    %v1224 = vpack.c.b16 %v756, %v754
    %v1225 = vpack.c.b16 %v759, %v757
    %v1226 = vpack.c.b16 %v760, %v758
    %v1227 = vpack.c.b16 %v763, %v761
    %v1228 = vpack.c.b16 %v764, %v762
    %v1229 = vpack.c.b16 %v767, %v765
    %v1230 = vpack.c.b16 %v768, %v766
    %v1231 = vpack.c.b16 %v771, %v769
    %v1232 = vpack.c.b16 %v772, %v770
    %v1233 = vpack.c.b16 %v775, %v773
    %v1234 = vpack.c.b16 %v776, %v774
    %v1235 = vpack.c.b16 %v779, %v777
    %v1236 = vpack.c.b16 %v780, %v778
    %v1237 = vpack.c.b16 %v783, %v781
    %v1238 = vpack.c.b16 %v784, %v782
    %v1239 = vpack.c.b16 %v787, %v785
    %v1240 = vpack.c.b16 %v788, %v786
    %v1241 = vpack.c.b16 %v791, %v789
    %v1242 = vpack.c.b16 %v792, %v790
    %v1243 = vpack.c.b16 %v795, %v793
    %v1244 = vpack.c.b16 %v796, %v794
    %v1245 = vpack.c.b16 %v799, %v797
    %v1246 = vpack.c.b16 %v800, %v798
    %v1247 = vpack.c.b16 %v803, %v801
    %v1248 = vpack.c.b16 %v804, %v802
    %v1249 = vpack.c.b16 %v807, %v805
    %v1250 = vpack.c.b16 %v808, %v806
    %v1251 = vpack.c.b16 %v811, %v809
    %v1252 = vpack.c.b16 %v812, %v810
    %v1253 = vpack.c.b16 %v815, %v813
    %v1254 = vpack.c.b16 %v816, %v814
    %v1255 = vpack.c.b16 %v819, %v817
    %v1256 = vpack.c.b16 %v820, %v818
    %v1257 = vpack.c.b16 %v823, %v821
    %v1258 = vpack.c.b16 %v824, %v822
    %v1259 = vpack.c.b16 %v827, %v825
    %v1260 = vpack.c.b16 %v828, %v826
    %v1261 = vpack.c.b16 %v831, %v829
    %v1262 = vpack.c.b16 %v832, %v830
    %v1263 = vpack.c.b16 %v835, %v833
    %v1264 = vpack.c.b16 %v836, %v834
    %v1265 = vpack.c.b16 %v839, %v837
    %v1266 = vpack.c.b16 %v840, %v838
    %v1267 = vpack.c.b16 %v843, %v841
    %v1268 = vpack.c.b16 %v844, %v842
    %v1269 = vpack.c.b16 %v847, %v845
    %v1270 = vpack.c.b16 %v848, %v846
    %v1271 = vpack.c.b16 %v851, %v849
    %v1272 = vpack.c.b16 %v852, %v850
    %v1273 = vpack.c.b16 %v855, %v853
    %v1274 = vpack.c.b16 %v856, %v854
    %v1275 = vpack.c.b16 %v859, %v857
    %v1276 = vpack.c.b16 %v860, %v858
    %v1277 = vpack.c.b16 %v863, %v861
    %v1278 = vpack.c.b16 %v864, %v862
    %v1279 = vpack.c.b16 %v867, %v865
    %v1280 = vpack.c.b16 %v868, %v866
    %v1281 = vpack.c.b16 %v871, %v869
    %v1282 = vpack.c.b16 %v872, %v870
    %v1283 = vpack.c.b16 %v875, %v873
    %v1284 = vpack.c.b16 %v876, %v874
    %v1285 = vpack.c.b16 %v879, %v877
    %v1286 = vpack.c.b16 %v880, %v878
    %v1287 = vpack.c.b16 %v883, %v881
    %v1288 = vpack.c.b16 %v884, %v882
    %v1289 = vpack.c.b16 %v887, %v885
    %v1290 = vpack.c.b16 %v888, %v886
    %v1291 = vpack.c.b16 %v891, %v889
    %v1292 = vpack.c.b16 %v892, %v890
    %v1293 = vpack.c.b16 %v895, %v893
    %v1294 = vpack.c.b16 %v896, %v894
    %v1295 = vpack.c.b16 %v899, %v897
    %v1296 = vpack.c.b16 %v900, %v898
    %v1297 = vpack.c.b16 %v903, %v901
    %v1298 = vpack.c.b16 %v904, %v902
    %v1299 = vpack.c.b16 %v907, %v905
    %v1300 = vpack.c.b16 %v908, %v906
    %v1301 = vpack.c.b16 %v911, %v909
    %v1302 = vpack.c.b16 %v912, %v910
    %v1303 = vpack.c.b16 %v915, %v913
    %v1304 = vpack.c.b16 %v916, %v914
    %v1305 = vpack.c.b16 %v919, %v917
    %v1306 = vpack.c.b16 %v920, %v918
    %v1307 = vpack.c.b16 %v923, %v921
    %v1308 = vpack.c.b16 %v924, %v922
    %v1309 = vpack.c.b16 %v927, %v925
    %v1310 = vpack.c.b16 %v928, %v926
    %v1311 = vpack.c.b16 %v931, %v929
    %v1312 = vpack.c.b16 %v932, %v930
    %v1313 = vpack.c.b16 %v935, %v933
    %v1314 = vpack.c.b16 %v936, %v934
    %v1315 = vpack.c.b16 %v939, %v937
    %v1316 = vpack.c.b16 %v940, %v938
    %v1317 = vpack.c.b16 %v943, %v941
    %v1318 = vpack.c.b16 %v944, %v942
    %v1319 = vpack.c.b16 %v947, %v945
    %v1320 = vpack.c.b16 %v948, %v946
    %v1321 = vpack.c.b16 %v951, %v949
    %v1322 = vpack.c.b16 %v952, %v950
    %v1323 = vpack.c.b16 %v955, %v953
    %v1324 = vpack.c.b16 %v956, %v954
    %v1325 = vpack.c.b16 %v959, %v957
    %v1326 = vpack.c.b16 %v960, %v958
    %v1327 = vpack.c.b16 %v963, %v961
    %v1328 = vpack.c.b16 %v964, %v962
    %v1329 = vpack.c.b16 %v967, %v965
    %v1330 = vpack.c.b16 %v968, %v966
    %v1331 = vpack.c.b16 %v971, %v969
    %v1332 = vpack.c.b16 %v972, %v970
    %v1333 = vpack.c.b16 %v975, %v973
    %v1334 = vpack.c.b16 %v976, %v974
    %v1335 = vpack.c.b16 %v979, %v977
    %v1336 = vpack.c.b16 %v980, %v978
    %v1337 = vpack.c.b16 %v983, %v981
    %v1338 = vpack.c.b16 %v984, %v982
    %v1339 = vpack.c.b16 %v987, %v985
    %v1340 = vpack.c.b16 %v988, %v986
    %v1341 = vpack.c.b16 %v991, %v989
    %v1342 = vpack.c.b16 %v992, %v990
    %v1343 = vpack.c.b16 %v995, %v993
    %v1344 = vpack.c.b16 %v996, %v994
    %v1345 = vpack.c.b16 %v999, %v997
    %v1346 = vpack.c.b16 %v1000, %v998
    %v1347 = vpack.c.b16 %v1003, %v1001
    %v1348 = vpack.c.b16 %v1004, %v1002
    %v1349 = vpack.c.b16 %v1007, %v1005
    %v1350 = vpack.c.b16 %v1008, %v1006
    %v1351 = vpack.c.b16 %v1011, %v1009
    %v1352 = vpack.c.b16 %v1012, %v1010
    %v1353 = vpack.c.b16 %v1015, %v1013
    %v1354 = vpack.c.b16 %v1016, %v1014
    %v1355 = vpack.c.b16 %v1019, %v1017
    %v1356 = vpack.c.b16 %v1020, %v1018
    %v1357 = vpack.c.b16 %v1023, %v1021
    %v1358 = vpack.c.b16 %v1024, %v1022
    %v1359 = vpack.c.b16 %v1027, %v1025
    %v1360 = vpack.c.b16 %v1028, %v1026
    %v1361 = vpack.c.b16 %v1031, %v1029
    %v1362 = vpack.c.b16 %v1032, %v1030
    %v1363 = vpack.c.b16 %v1035, %v1033
    %v1364 = vpack.c.b16 %v1036, %v1034
    %v1365 = vpack.c.b16 %v1039, %v1037
    %v1366 = vpack.c.b16 %v1040, %v1038
    %v1367 = vpack.c.b16 %v1043, %v1041
    %v1368 = vpack.c.b16 %v1044, %v1042
    %v1369 = vpack.c.b16 %v1047, %v1045
    %v1370 = vpack.c.b16 %v1048, %v1046
    %v1371 = vpack.c.b16 %v1051, %v1049
    %v1372 = vpack.c.b16 %v1052, %v1050
    %v1373 = vpack.c.b16 %v1055, %v1053
    %v1374 = vpack.c.b16 %v1056, %v1054
    %v1375 = vpack.c.b16 %v1059, %v1057
    %v1376 = vpack.c.b16 %v1060, %v1058
    %v1377 = vpack.c.b16 %v1063, %v1061
    %v1378 = vpack.c.b16 %v1064, %v1062
    %v1379 = vpack.c.b16 %v1067, %v1065
    %v1380 = vpack.c.b16 %v1068, %v1066
    %v1381 = vpack.c.b16 %v1071, %v1069
    %v1382 = vpack.c.b16 %v1072, %v1070
    %v1383 = vpack.c.b16 %v1075, %v1073
    %v1384 = vpack.c.b16 %v1076, %v1074
    %v1385 = vpack.c.b16 %v1079, %v1077
    %v1386 = vpack.c.b16 %v1080, %v1078
    %v1387 = vpack.c.b16 %v1083, %v1081
    %v1388 = vpack.c.b16 %v1084, %v1082
    %v1389 = vpack.c.b16 %v1087, %v1085
    %v1390 = vpack.c.b16 %v1088, %v1086
    %v1391 = vpack.c.b16 %v1091, %v1089
    %v1392 = vpack.c.b16 %v1092, %v1090
    %v1393 = vpack.c.b16 %v1095, %v1093
    %v1394 = vpack.c.b16 %v1096, %v1094
    %v1395 = vpack.c.b16 %v1099, %v1097
    %v1396 = vpack.c.b16 %v1100, %v1098
    %v1397 = vpack.c.b16 %v1103, %v1101
    %v1398 = vpack.c.b16 %v1104, %v1102
    %v1399 = vpack.c.b16 %v1107, %v1105
    %v1400 = vpack.c.b16 %v1108, %v1106
    %v1401 = vpack.c.b16 %v1111, %v1109
    %v1402 = vpack.c.b16 %v1112, %v1110
    %v1403 = vpack.c.b16 %v1115, %v1113
    %v1404 = vpack.c.b16 %v1116, %v1114
    %v1405 = vpack.c.b16 %v1119, %v1117
    %v1406 = vpack.c.b16 %v1120, %v1118
    %v1407 = vpack.c.b16 %v1123, %v1121
    %v1408 = vpack.c.b16 %v1124, %v1122
    %v1409 = vpack.c.b16 %v1127, %v1125
    %v1410 = vpack.c.b16 %v1128, %v1126
    %v1411 = vpack.c.b16 %v1131, %v1129
    %v1412 = vpack.c.b16 %v1132, %v1130
    %v1413 = vpack.c.b16 %v1135, %v1133
    %v1414 = vpack.c.b16 %v1136, %v1134
    %v1415 = vpack.c.b16 %v1139, %v1137
    %v1416 = vpack.c.b16 %v1140, %v1138
    %v1417 = vpack.c.b16 %v1143, %v1141
    %v1418 = vpack.c.b16 %v1144, %v1142
    %v1419 = vpack.c.b16 %v1147, %v1145
    %v1420 = vpack.c.b16 %v1148, %v1146
    %v1421 = vpack.c.b16 %v1151, %v1149
    %v1422 = vpack.c.b16 %v1152, %v1150
    %v1423 = vpack.c.b16 %v1155, %v1153
    %v1424 = vpack.c.b16 %v1156, %v1154
    %v1425 = vpack.c.b16 %v1159, %v1157
    %v1426 = vpack.c.b16 %v1160, %v1158
    %v1427 = vpack.c.b16 %v1163, %v1161
    %v1428 = vpack.c.b16 %v1164, %v1162
    %v1429 = vpack.c.b16 %v1167, %v1165
    %v1430 = vpack.c.b16 %v1168, %v1166
    %v1431 = vpack.c.b16 %v1171, %v1169
    %v1432 = vpack.c.b16 %v1172, %v1170
    %v1433 = vpack.c.b16 %v1175, %v1173
    %v1434 = vpack.c.b16 %v1176, %v1174
    %v1435 = vpack.c.b16 %v1179, %v1177
    %v1436 = vpack.c.b16 %v1180, %v1178
    %1693 = vmatprep.subr.bf16.mxu0 %v1196
    %1694 = vmatpush1.bf16.msra.mxu0 %v1195
    %1695 = vmatprep.subr.bf16.mxu0 %v1194
    %1696 = vmatpush1.bf16.msra.mxu0 %v1193
    %1697 = vmatprep.subr.bf16.mxu0 %v1192
    %1698 = vmatpush1.bf16.msra.mxu0 %v1191
    %1699 = vmatprep.subr.bf16.mxu0 %v1190
    %1700 = vmatpush1.bf16.msra.mxu0 %v1189
    %1701 = vmatprep.subr.bf16.mxu0 %v1188
    %1702 = vmatpush1.bf16.msra.mxu0 %v1187
    %1703 = vmatprep.subr.bf16.mxu0 %v1186
    %1704 = vmatpush1.bf16.msra.mxu0 %v1185
    %1705 = vmatprep.subr.bf16.mxu0 %v1184
    %1706 = vmatpush1.bf16.msra.mxu0 %v1183
    %1707 = vmatprep.subr.bf16.mxu0 %v1182
    %1708 = vmatpush1.bf16.msra.mxu0 %v1181
    %1709 = vmatprep.subr.bf16.mxu0 %v1212
    %1710 = vmatpush2.bf16.msra.mxu0 %v1211
    %1711 = vmatprep.subr.bf16.mxu0 %v1210
    %1712 = vmatpush2.bf16.msra.mxu0 %v1209
    %1713 = vmatprep.subr.bf16.mxu0 %v1208
    %1714 = vmatpush2.bf16.msra.mxu0 %v1207
    %1715 = vmatprep.subr.bf16.mxu0 %v1206
    %1716 = vmatpush2.bf16.msra.mxu0 %v1205
    %1717 = vmatprep.subr.bf16.mxu0 %v1204
    %1718 = vmatpush2.bf16.msra.mxu0 %v1203
    %1719 = vmatprep.subr.bf16.mxu0 %v1202
    %1720 = vmatpush2.bf16.msra.mxu0 %v1201
    %1721 = vmatprep.subr.bf16.mxu0 %v1200
    %1722 = vmatpush2.bf16.msra.mxu0 %v1199
    %1723 = vmatprep.subr.bf16.mxu0 %v1198
    %1724 = vmatpush2.bf16.msra.mxu0 %v1197
    %1725 = vmatprep.mubr.bf16.mxu0 %v382
    %1726 = vmatmul.mubr.bf16.gmra.mxu0 %v381
    %v1727 = vpop.f32.mrf.mxu0
    %v1728 = vadd.f32 %v350, %v1727
    %v1729 = vpop.f32.mrf.mxu0
    %v1730 = vadd.f32 %v354, %v1729
    %v1731 = vpop.f32.mrf.mxu0
    %v1732 = vpop.f32.mrf.mxu0
    %1733 = vdwg.mxu0
    %1734 = vmatprep.subr.bf16.mxu0 %v1228
    %1735 = vmatpush1.bf16.msra.mxu0 %v1227
    %1736 = vmatprep.subr.bf16.mxu0 %v1226
    %1737 = vmatpush1.bf16.msra.mxu0 %v1225
    %1738 = vmatprep.subr.bf16.mxu0 %v1224
    %1739 = vmatpush1.bf16.msra.mxu0 %v1223
    %1740 = vmatprep.subr.bf16.mxu0 %v1222
    %1741 = vmatpush1.bf16.msra.mxu0 %v1221
    %1742 = vmatprep.subr.bf16.mxu0 %v1220
    %1743 = vmatpush1.bf16.msra.mxu0 %v1219
    %1744 = vmatprep.subr.bf16.mxu0 %v1218
    %1745 = vmatpush1.bf16.msra.mxu0 %v1217
    %1746 = vmatprep.subr.bf16.mxu0 %v1216
    %1747 = vmatpush1.bf16.msra.mxu0 %v1215
    %1748 = vmatprep.subr.bf16.mxu0 %v1214
    %1749 = vmatpush1.bf16.msra.mxu0 %v1213
    %1750 = vmatprep.subr.bf16.mxu0 %v1244
    %1751 = vmatpush2.bf16.msra.mxu0 %v1243
    %1752 = vmatprep.subr.bf16.mxu0 %v1242
    %1753 = vmatpush2.bf16.msra.mxu0 %v1241
    %1754 = vmatprep.subr.bf16.mxu0 %v1240
    %1755 = vmatpush2.bf16.msra.mxu0 %v1239
    %1756 = vmatprep.subr.bf16.mxu0 %v1238
    %1757 = vmatpush2.bf16.msra.mxu0 %v1237
    %1758 = vmatprep.subr.bf16.mxu0 %v1236
    %1759 = vmatpush2.bf16.msra.mxu0 %v1235
    %1760 = vmatprep.subr.bf16.mxu0 %v1234
    %1761 = vmatpush2.bf16.msra.mxu0 %v1233
    %1762 = vmatprep.subr.bf16.mxu0 %v1232
    %1763 = vmatpush2.bf16.msra.mxu0 %v1231
    %1764 = vmatprep.subr.bf16.mxu0 %v1230
    %1765 = vmatpush2.bf16.msra.mxu0 %v1229
    %1766 = vmatprep.mubr.bf16.mxu0 %v384
    %1767 = vmatmul.mubr.bf16.gmra.mxu0 %v383
    %v1768 = vpop.f32.mrf.mxu0
    %v1769 = vadd.f32 %v1728, %v1768
    %v1770 = vpop.f32.mrf.mxu0
    %v1771 = vadd.f32 %v1730, %v1770
    %v1772 = vpop.f32.mrf.mxu0
    %v1773 = vpop.f32.mrf.mxu0
    %1774 = vdwg.mxu0
    %1775 = vmatprep.subr.bf16.mxu0 %v1260
    %1776 = vmatpush1.bf16.msra.mxu0 %v1259
    %1777 = vmatprep.subr.bf16.mxu0 %v1258
    %1778 = vmatpush1.bf16.msra.mxu0 %v1257
    %1779 = vmatprep.subr.bf16.mxu0 %v1256
    %1780 = vmatpush1.bf16.msra.mxu0 %v1255
    %1781 = vmatprep.subr.bf16.mxu0 %v1254
    %1782 = vmatpush1.bf16.msra.mxu0 %v1253
    %1783 = vmatprep.subr.bf16.mxu0 %v1252
    %1784 = vmatpush1.bf16.msra.mxu0 %v1251
    %1785 = vmatprep.subr.bf16.mxu0 %v1250
    %1786 = vmatpush1.bf16.msra.mxu0 %v1249
    %1787 = vmatprep.subr.bf16.mxu0 %v1248
    %1788 = vmatpush1.bf16.msra.mxu0 %v1247
    %1789 = vmatprep.subr.bf16.mxu0 %v1246
    %1790 = vmatpush1.bf16.msra.mxu0 %v1245
    %1791 = vmatprep.subr.bf16.mxu0 %v1276
    %1792 = vmatpush2.bf16.msra.mxu0 %v1275
    %1793 = vmatprep.subr.bf16.mxu0 %v1274
    %1794 = vmatpush2.bf16.msra.mxu0 %v1273
    %1795 = vmatprep.subr.bf16.mxu0 %v1272
    %1796 = vmatpush2.bf16.msra.mxu0 %v1271
    %1797 = vmatprep.subr.bf16.mxu0 %v1270
    %1798 = vmatpush2.bf16.msra.mxu0 %v1269
    %1799 = vmatprep.subr.bf16.mxu0 %v1268
    %1800 = vmatpush2.bf16.msra.mxu0 %v1267
    %1801 = vmatprep.subr.bf16.mxu0 %v1266
    %1802 = vmatpush2.bf16.msra.mxu0 %v1265
    %1803 = vmatprep.subr.bf16.mxu0 %v1264
    %1804 = vmatpush2.bf16.msra.mxu0 %v1263
    %1805 = vmatprep.subr.bf16.mxu0 %v1262
    %1806 = vmatpush2.bf16.msra.mxu0 %v1261
    %1807 = vmatprep.mubr.bf16.mxu0 %v386
    %1808 = vmatmul.mubr.bf16.gmra.mxu0 %v385
    %v1809 = vpop.f32.mrf.mxu0
    %v1810 = vadd.f32 %v1769, %v1809
    %v1811 = vpop.f32.mrf.mxu0
    %v1812 = vadd.f32 %v1771, %v1811
    %v1813 = vpop.f32.mrf.mxu0
    %v1814 = vpop.f32.mrf.mxu0
    %1815 = vdwg.mxu0
    %1816 = vmatprep.subr.bf16.mxu0 %v1292
    %1817 = vmatpush1.bf16.msra.mxu0 %v1291
    %1818 = vmatprep.subr.bf16.mxu0 %v1290
    %1819 = vmatpush1.bf16.msra.mxu0 %v1289
    %1820 = vmatprep.subr.bf16.mxu0 %v1288
    %1821 = vmatpush1.bf16.msra.mxu0 %v1287
    %1822 = vmatprep.subr.bf16.mxu0 %v1286
    %1823 = vmatpush1.bf16.msra.mxu0 %v1285
    %1824 = vmatprep.subr.bf16.mxu0 %v1284
    %1825 = vmatpush1.bf16.msra.mxu0 %v1283
    %1826 = vmatprep.subr.bf16.mxu0 %v1282
    %1827 = vmatpush1.bf16.msra.mxu0 %v1281
    %1828 = vmatprep.subr.bf16.mxu0 %v1280
    %1829 = vmatpush1.bf16.msra.mxu0 %v1279
    %1830 = vmatprep.subr.bf16.mxu0 %v1278
    %1831 = vmatpush1.bf16.msra.mxu0 %v1277
    %1832 = vmatprep.subr.bf16.mxu0 %v1308
    %1833 = vmatpush2.bf16.msra.mxu0 %v1307
    %1834 = vmatprep.subr.bf16.mxu0 %v1306
    %1835 = vmatpush2.bf16.msra.mxu0 %v1305
    %1836 = vmatprep.subr.bf16.mxu0 %v1304
    %1837 = vmatpush2.bf16.msra.mxu0 %v1303
    %1838 = vmatprep.subr.bf16.mxu0 %v1302
    %1839 = vmatpush2.bf16.msra.mxu0 %v1301
    %1840 = vmatprep.subr.bf16.mxu0 %v1300
    %1841 = vmatpush2.bf16.msra.mxu0 %v1299
    %1842 = vmatprep.subr.bf16.mxu0 %v1298
    %1843 = vmatpush2.bf16.msra.mxu0 %v1297
    %1844 = vmatprep.subr.bf16.mxu0 %v1296
    %1845 = vmatpush2.bf16.msra.mxu0 %v1295
    %1846 = vmatprep.subr.bf16.mxu0 %v1294
    %1847 = vmatpush2.bf16.msra.mxu0 %v1293
    %1848 = vmatprep.mubr.bf16.mxu0 %v388
    %1849 = vmatmul.mubr.bf16.gmra.mxu0 %v387
    %v1850 = vpop.f32.mrf.mxu0
    %v1851 = vadd.f32 %v1810, %v1850
    %v1852 = vpop.f32.mrf.mxu0
    %v1853 = vadd.f32 %v1812, %v1852
    %v1854 = vpop.f32.mrf.mxu0
    %v1855 = vpop.f32.mrf.mxu0
    %1856 = vdwg.mxu0
    %1857 = vmatprep.subr.bf16.mxu0 %v1324
    %1858 = vmatpush1.bf16.msra.mxu0 %v1323
    %1859 = vmatprep.subr.bf16.mxu0 %v1322
    %1860 = vmatpush1.bf16.msra.mxu0 %v1321
    %1861 = vmatprep.subr.bf16.mxu0 %v1320
    %1862 = vmatpush1.bf16.msra.mxu0 %v1319
    %1863 = vmatprep.subr.bf16.mxu0 %v1318
    %1864 = vmatpush1.bf16.msra.mxu0 %v1317
    %1865 = vmatprep.subr.bf16.mxu0 %v1316
    %1866 = vmatpush1.bf16.msra.mxu0 %v1315
    %1867 = vmatprep.subr.bf16.mxu0 %v1314
    %1868 = vmatpush1.bf16.msra.mxu0 %v1313
    %1869 = vmatprep.subr.bf16.mxu0 %v1312
    %1870 = vmatpush1.bf16.msra.mxu0 %v1311
    %1871 = vmatprep.subr.bf16.mxu0 %v1310
    %1872 = vmatpush1.bf16.msra.mxu0 %v1309
    %1873 = vmatprep.subr.bf16.mxu0 %v1340
    %1874 = vmatpush2.bf16.msra.mxu0 %v1339
    %1875 = vmatprep.subr.bf16.mxu0 %v1338
    %1876 = vmatpush2.bf16.msra.mxu0 %v1337
    %1877 = vmatprep.subr.bf16.mxu0 %v1336
    %1878 = vmatpush2.bf16.msra.mxu0 %v1335
    %1879 = vmatprep.subr.bf16.mxu0 %v1334
    %1880 = vmatpush2.bf16.msra.mxu0 %v1333
    %1881 = vmatprep.subr.bf16.mxu0 %v1332
    %1882 = vmatpush2.bf16.msra.mxu0 %v1331
    %1883 = vmatprep.subr.bf16.mxu0 %v1330
    %1884 = vmatpush2.bf16.msra.mxu0 %v1329
    %1885 = vmatprep.subr.bf16.mxu0 %v1328
    %1886 = vmatpush2.bf16.msra.mxu0 %v1327
    %1887 = vmatprep.subr.bf16.mxu0 %v1326
    %1888 = vmatpush2.bf16.msra.mxu0 %v1325
    %1889 = vmatprep.mubr.bf16.mxu0 %v390
    %1890 = vmatmul.mubr.bf16.gmra.mxu0 %v389
    %v1891 = vpop.f32.mrf.mxu0
    %v1892 = vadd.f32 %v1851, %v1891
    %v1893 = vpop.f32.mrf.mxu0
    %v1894 = vadd.f32 %v1853, %v1893
    %v1895 = vpop.f32.mrf.mxu0
    %v1896 = vpop.f32.mrf.mxu0
    %1897 = vdwg.mxu0
    %1898 = vmatprep.subr.bf16.mxu0 %v1356
    %1899 = vmatpush1.bf16.msra.mxu0 %v1355
    %1900 = vmatprep.subr.bf16.mxu0 %v1354
    %1901 = vmatpush1.bf16.msra.mxu0 %v1353
    %1902 = vmatprep.subr.bf16.mxu0 %v1352
    %1903 = vmatpush1.bf16.msra.mxu0 %v1351
    %1904 = vmatprep.subr.bf16.mxu0 %v1350
    %1905 = vmatpush1.bf16.msra.mxu0 %v1349
    %1906 = vmatprep.subr.bf16.mxu0 %v1348
    %1907 = vmatpush1.bf16.msra.mxu0 %v1347
    %1908 = vmatprep.subr.bf16.mxu0 %v1346
    %1909 = vmatpush1.bf16.msra.mxu0 %v1345
    %1910 = vmatprep.subr.bf16.mxu0 %v1344
    %1911 = vmatpush1.bf16.msra.mxu0 %v1343
    %1912 = vmatprep.subr.bf16.mxu0 %v1342
    %1913 = vmatpush1.bf16.msra.mxu0 %v1341
    %1914 = vmatprep.subr.bf16.mxu0 %v1372
    %1915 = vmatpush2.bf16.msra.mxu0 %v1371
    %1916 = vmatprep.subr.bf16.mxu0 %v1370
    %1917 = vmatpush2.bf16.msra.mxu0 %v1369
    %1918 = vmatprep.subr.bf16.mxu0 %v1368
    %1919 = vmatpush2.bf16.msra.mxu0 %v1367
    %1920 = vmatprep.subr.bf16.mxu0 %v1366
    %1921 = vmatpush2.bf16.msra.mxu0 %v1365
    %1922 = vmatprep.subr.bf16.mxu0 %v1364
    %1923 = vmatpush2.bf16.msra.mxu0 %v1363
    %1924 = vmatprep.subr.bf16.mxu0 %v1362
    %1925 = vmatpush2.bf16.msra.mxu0 %v1361
    %1926 = vmatprep.subr.bf16.mxu0 %v1360
    %1927 = vmatpush2.bf16.msra.mxu0 %v1359
    %1928 = vmatprep.subr.bf16.mxu0 %v1358
    %1929 = vmatpush2.bf16.msra.mxu0 %v1357
    %1930 = vmatprep.mubr.bf16.mxu0 %v392
    %1931 = vmatmul.mubr.bf16.gmra.mxu0 %v391
    %v1932 = vpop.f32.mrf.mxu0
    %v1933 = vadd.f32 %v1892, %v1932
    %v1934 = vpop.f32.mrf.mxu0
    %v1935 = vadd.f32 %v1894, %v1934
    %v1936 = vpop.f32.mrf.mxu0
    %v1937 = vpop.f32.mrf.mxu0
    %1938 = vdwg.mxu0
    %1939 = vmatprep.subr.bf16.mxu0 %v1388
    %1940 = vmatpush1.bf16.msra.mxu0 %v1387
    %1941 = vmatprep.subr.bf16.mxu0 %v1386
    %1942 = vmatpush1.bf16.msra.mxu0 %v1385
    %1943 = vmatprep.subr.bf16.mxu0 %v1384
    %1944 = vmatpush1.bf16.msra.mxu0 %v1383
    %1945 = vmatprep.subr.bf16.mxu0 %v1382
    %1946 = vmatpush1.bf16.msra.mxu0 %v1381
    %1947 = vmatprep.subr.bf16.mxu0 %v1380
    %1948 = vmatpush1.bf16.msra.mxu0 %v1379
    %1949 = vmatprep.subr.bf16.mxu0 %v1378
    %1950 = vmatpush1.bf16.msra.mxu0 %v1377
    %1951 = vmatprep.subr.bf16.mxu0 %v1376
    %1952 = vmatpush1.bf16.msra.mxu0 %v1375
    %1953 = vmatprep.subr.bf16.mxu0 %v1374
    %1954 = vmatpush1.bf16.msra.mxu0 %v1373
    %1955 = vmatprep.subr.bf16.mxu0 %v1404
    %1956 = vmatpush2.bf16.msra.mxu0 %v1403
    %1957 = vmatprep.subr.bf16.mxu0 %v1402
    %1958 = vmatpush2.bf16.msra.mxu0 %v1401
    %1959 = vmatprep.subr.bf16.mxu0 %v1400
    %1960 = vmatpush2.bf16.msra.mxu0 %v1399
    %1961 = vmatprep.subr.bf16.mxu0 %v1398
    %1962 = vmatpush2.bf16.msra.mxu0 %v1397
    %1963 = vmatprep.subr.bf16.mxu0 %v1396
    %1964 = vmatpush2.bf16.msra.mxu0 %v1395
    %1965 = vmatprep.subr.bf16.mxu0 %v1394
    %1966 = vmatpush2.bf16.msra.mxu0 %v1393
    %1967 = vmatprep.subr.bf16.mxu0 %v1392
    %1968 = vmatpush2.bf16.msra.mxu0 %v1391
    %1969 = vmatprep.subr.bf16.mxu0 %v1390
    %1970 = vmatpush2.bf16.msra.mxu0 %v1389
    %1971 = vmatprep.mubr.bf16.mxu0 %v394
    %1972 = vmatmul.mubr.bf16.gmra.mxu0 %v393
    %v1973 = vpop.f32.mrf.mxu0
    %v1974 = vadd.f32 %v1933, %v1973
    %v1975 = vpop.f32.mrf.mxu0
    %v1976 = vadd.f32 %v1935, %v1975
    %v1977 = vpop.f32.mrf.mxu0
    %v1978 = vpop.f32.mrf.mxu0
    %1979 = vdwg.mxu0
    %1980 = vmatprep.subr.bf16.mxu0 %v1420
    %1981 = vmatpush1.bf16.msra.mxu0 %v1419
    %1982 = vmatprep.subr.bf16.mxu0 %v1418
    %1983 = vmatpush1.bf16.msra.mxu0 %v1417
    %1984 = vmatprep.subr.bf16.mxu0 %v1416
    %1985 = vmatpush1.bf16.msra.mxu0 %v1415
    %1986 = vmatprep.subr.bf16.mxu0 %v1414
    %1987 = vmatpush1.bf16.msra.mxu0 %v1413
    %1988 = vmatprep.subr.bf16.mxu0 %v1412
    %1989 = vmatpush1.bf16.msra.mxu0 %v1411
    %1990 = vmatprep.subr.bf16.mxu0 %v1410
    %1991 = vmatpush1.bf16.msra.mxu0 %v1409
    %1992 = vmatprep.subr.bf16.mxu0 %v1408
    %1993 = vmatpush1.bf16.msra.mxu0 %v1407
    %1994 = vmatprep.subr.bf16.mxu0 %v1406
    %1995 = vmatpush1.bf16.msra.mxu0 %v1405
    %1996 = vmatprep.subr.bf16.mxu0 %v1436
    %1997 = vmatpush2.bf16.msra.mxu0 %v1435
    %1998 = vmatprep.subr.bf16.mxu0 %v1434
    %1999 = vmatpush2.bf16.msra.mxu0 %v1433
    %2000 = vmatprep.subr.bf16.mxu0 %v1432
    %2001 = vmatpush2.bf16.msra.mxu0 %v1431
    %2002 = vmatprep.subr.bf16.mxu0 %v1430
    %2003 = vmatpush2.bf16.msra.mxu0 %v1429
    %2004 = vmatprep.subr.bf16.mxu0 %v1428
    %2005 = vmatpush2.bf16.msra.mxu0 %v1427
    %2006 = vmatprep.subr.bf16.mxu0 %v1426
    %2007 = vmatpush2.bf16.msra.mxu0 %v1425
    %2008 = vmatprep.subr.bf16.mxu0 %v1424
    %2009 = vmatpush2.bf16.msra.mxu0 %v1423
    %2010 = vmatprep.subr.bf16.mxu0 %v1422
    %2011 = vmatpush2.bf16.msra.mxu0 %v1421
    %2012 = vmatprep.mubr.bf16.mxu0 %v396
    %2013 = vmatmul.mubr.bf16.gmra.mxu0 %v395
    %v2014 = vpop.f32.mrf.mxu0
    %v2015 = vadd.f32 %v1974, %v2014
    %v2016 = vpop.f32.mrf.mxu0
    %v2017 = vadd.f32 %v1976, %v2016
    %v2018 = vpop.f32.mrf.mxu0
    %v2019 = vpop.f32.mrf.mxu0
    %2020 = vdwg.mxu0
    %v2021 = vmax.f32 %v2015, 0.0
    %v2022 = vmax.f32 %v2017, 0.0
    %v2023 = vpack.c.bf16 %v2021, %v2021
    %v2024 = vpack.c.bf16 %v2022, %v2022
    %v2025 = vld [vmem:[#allocation7] sm:$0xf]
    %v2026 = vld [vmem:[#allocation7 + $0x4] sm:$0xf]
    %v2027 = vld [vmem:[#allocation7 + $0x8] sm:$0xf]
    %v2028 = vld [vmem:[#allocation7 + $0xc] sm:$0xf]
    %v2029 = vld [vmem:[#allocation7 + $0x10] sm:$0xf]
    %v2030 = vld [vmem:[#allocation7 + $0x14] sm:$0xf]
    %v2031 = vld [vmem:[#allocation7 + $0x18] sm:$0xf]
    %v2032 = vld [vmem:[#allocation7 + $0x1c] sm:$0xf]
    %v2033 = vld [vmem:[#allocation7 + $0x20] sm:$0xf]
    %v2034 = vld [vmem:[#allocation7 + $0x24] sm:$0xf]
    %v2035 = vld [vmem:[#allocation7 + $0x28] sm:$0xf]
    %v2036 = vld [vmem:[#allocation7 + $0x2c] sm:$0xf]
    %v2037 = vld [vmem:[#allocation7 + $0x30] sm:$0xf]
    %v2038 = vld [vmem:[#allocation7 + $0x34] sm:$0xf]
    %v2039 = vld [vmem:[#allocation7 + $0x38] sm:$0xf]
    %v2040 = vld [vmem:[#allocation7 + $0x3c] sm:$0xf]
    %v2041 = vld [vmem:[#allocation7 + $0x40] sm:$0xf]
    %v2042 = vld [vmem:[#allocation7 + $0x44] sm:$0xf]
    %v2043 = vld [vmem:[#allocation7 + $0x48] sm:$0xf]
    %v2044 = vld [vmem:[#allocation7 + $0x4c] sm:$0xf]
    %v2045 = vld [vmem:[#allocation7 + $0x50] sm:$0xf]
    %v2046 = vld [vmem:[#allocation7 + $0x54] sm:$0xf]
    %v2047 = vld [vmem:[#allocation7 + $0x58] sm:$0xf]
    %v2048 = vld [vmem:[#allocation7 + $0x5c] sm:$0xf]
    %v2049 = vld [vmem:[#allocation7 + $0x60] sm:$0xf]
    %v2050 = vld [vmem:[#allocation7 + $0x64] sm:$0xf]
    %v2051 = vld [vmem:[#allocation7 + $0x68] sm:$0xf]
    %v2052 = vld [vmem:[#allocation7 + $0x6c] sm:$0xf]
    %v2053 = vld [vmem:[#allocation7 + $0x70] sm:$0xf]
    %v2054 = vld [vmem:[#allocation7 + $0x74] sm:$0xf]
    %v2055 = vld [vmem:[#allocation7 + $0x78] sm:$0xf]
    %v2056 = vld [vmem:[#allocation7 + $0x7c] sm:$0xf]
    %v2057 = vld [vmem:[%s4] sm:$0x1]
    %v2059 = vlaneseq
    %v2060 = vshrl.u32 %v2059, 7
    %v2061 = vsub.s32 0, %v2060
    %v2062 = vrot.slane %v2057, %v2061
    %v2096 = vunpack.c.l.b16 %v2025
    %v2097 = vunpack.c.l.b16 %v2026
    %v2098 = vunpack.c.l.b16 %v2027
    %v2099 = vunpack.c.l.b16 %v2028
    %v2100 = vunpack.c.l.b16 %v2029
    %v2101 = vunpack.c.l.b16 %v2030
    %v2102 = vunpack.c.l.b16 %v2031
    %v2103 = vunpack.c.l.b16 %v2032
    %v2104 = vunpack.c.l.b16 %v2033
    %v2105 = vunpack.c.l.b16 %v2034
    %v2106 = vunpack.c.l.b16 %v2035
    %v2107 = vunpack.c.l.b16 %v2036
    %v2108 = vunpack.c.l.b16 %v2037
    %v2109 = vunpack.c.l.b16 %v2038
    %v2110 = vunpack.c.l.b16 %v2039
    %v2111 = vunpack.c.l.b16 %v2040
    %v2112 = vunpack.c.l.b16 %v2041
    %v2113 = vunpack.c.l.b16 %v2042
    %v2114 = vunpack.c.l.b16 %v2043
    %v2115 = vunpack.c.l.b16 %v2044
    %v2116 = vunpack.c.l.b16 %v2045
    %v2117 = vunpack.c.l.b16 %v2046
    %v2118 = vunpack.c.l.b16 %v2047
    %v2119 = vunpack.c.l.b16 %v2048
    %v2120 = vunpack.c.l.b16 %v2049
    %v2121 = vunpack.c.l.b16 %v2050
    %v2122 = vunpack.c.l.b16 %v2051
    %v2123 = vunpack.c.l.b16 %v2052
    %v2124 = vunpack.c.l.b16 %v2053
    %v2125 = vunpack.c.l.b16 %v2054
    %v2126 = vunpack.c.l.b16 %v2055
    %v2127 = vunpack.c.l.b16 %v2056
    %v2128 = vpack.c.b16 %v2097, %v2096
    %v2129 = vpack.c.b16 %v2099, %v2098
    %v2130 = vpack.c.b16 %v2101, %v2100
    %v2131 = vpack.c.b16 %v2103, %v2102
    %v2132 = vpack.c.b16 %v2105, %v2104
    %v2133 = vpack.c.b16 %v2107, %v2106
    %v2134 = vpack.c.b16 %v2109, %v2108
    %v2135 = vpack.c.b16 %v2111, %v2110
    %v2136 = vpack.c.b16 %v2113, %v2112
    %v2137 = vpack.c.b16 %v2115, %v2114
    %v2138 = vpack.c.b16 %v2117, %v2116
    %v2139 = vpack.c.b16 %v2119, %v2118
    %v2140 = vpack.c.b16 %v2121, %v2120
    %v2141 = vpack.c.b16 %v2123, %v2122
    %v2142 = vpack.c.b16 %v2125, %v2124
    %v2143 = vpack.c.b16 %v2127, %v2126
    %2160 = vmatprep.subr.bf16.mxu0 0
    %2161 = vmatpush1.bf16.msra.mxu0 %v2135
    %2162 = vmatprep.subr.bf16.mxu0 0
    %2163 = vmatpush1.bf16.msra.mxu0 %v2134
    %2164 = vmatprep.subr.bf16.mxu0 0
    %2165 = vmatpush1.bf16.msra.mxu0 %v2133
    %2166 = vmatprep.subr.bf16.mxu0 0
    %2167 = vmatpush1.bf16.msra.mxu0 %v2132
    %2168 = vmatprep.subr.bf16.mxu0 0
    %2169 = vmatpush1.bf16.msra.mxu0 %v2131
    %2170 = vmatprep.subr.bf16.mxu0 0
    %2171 = vmatpush1.bf16.msra.mxu0 %v2130
    %2172 = vmatprep.subr.bf16.mxu0 0
    %2173 = vmatpush1.bf16.msra.mxu0 %v2129
    %2174 = vmatprep.subr.bf16.mxu0 0
    %2175 = vmatpush1.bf16.msra.mxu0 %v2128
    %2176 = vmatprep.subr.bf16.mxu0 0
    %2177 = vmatpush2.bf16.msra.mxu0 %v2143
    %2178 = vmatprep.subr.bf16.mxu0 0
    %2179 = vmatpush2.bf16.msra.mxu0 %v2142
    %2180 = vmatprep.subr.bf16.mxu0 0
    %2181 = vmatpush2.bf16.msra.mxu0 %v2141
    %2182 = vmatprep.subr.bf16.mxu0 0
    %2183 = vmatpush2.bf16.msra.mxu0 %v2140
    %2184 = vmatprep.subr.bf16.mxu0 0
    %2185 = vmatpush2.bf16.msra.mxu0 %v2139
    %2186 = vmatprep.subr.bf16.mxu0 0
    %2187 = vmatpush2.bf16.msra.mxu0 %v2138
    %2188 = vmatprep.subr.bf16.mxu0 0
    %2189 = vmatpush2.bf16.msra.mxu0 %v2137
    %2190 = vmatprep.subr.bf16.mxu0 0
    %2191 = vmatpush2.bf16.msra.mxu0 %v2136
    %2192 = vmatprep.mubr.bf16.mxu0 %v2024
    %2193 = vmatmul.mubr.bf16.gmra.mxu0 %v2023
    %v2194 = vpop.f32.mrf.mxu0
    %v2195 = vadd.f32 %v2062, %v2194
    %v2196 = vpop.f32.mrf.mxu0
    %v2197 = vpop.f32.mrf.mxu0
    %v2198 = vpop.f32.mrf.mxu0
    %2199 = vdwg.mxu0
    %v2200 = vmax.f32 %v2195, 0.0
    %v2201 = vpack.c.bf16 %v2200, %v2200
    %v2202 = vld [vmem:[#allocation8] sm:$0xf]
    %v2203 = vld [vmem:[#allocation8 + $0x4] sm:$0xf]
    %v2204 = vld [vmem:[#allocation8 + $0x8] sm:$0xf]
    %v2205 = vld [vmem:[#allocation8 + $0xc] sm:$0xf]
    %v2206 = vld [vmem:[#allocation8 + $0x10] sm:$0xf]
    %v2207 = vld [vmem:[#allocation8 + $0x14] sm:$0xf]
    %v2208 = vld [vmem:[#allocation8 + $0x18] sm:$0xf]
    %v2209 = vld [vmem:[#allocation8 + $0x1c] sm:$0xf]
    %v2210 = vld [vmem:[#allocation8 + $0x20] sm:$0xf]
    %v2211 = vld [vmem:[#allocation8 + $0x24] sm:$0xf]
    %v2212 = vld [vmem:[#allocation8 + $0x28] sm:$0xf]
    %v2213 = vld [vmem:[#allocation8 + $0x2c] sm:$0xf]
    %v2214 = vld [vmem:[#allocation8 + $0x30] sm:$0xf]
    %v2215 = vld [vmem:[#allocation8 + $0x34] sm:$0xf]
    %v2216 = vld [vmem:[#allocation8 + $0x38] sm:$0xf]
    %v2217 = vld [vmem:[#allocation8 + $0x3c] sm:$0xf]
    %v2218 = vld [vmem:[%s6] sm:$0x1]
    %v2220 = vlaneseq
    %v2221 = vshrl.u32 %v2220, 7
    %v2222 = vsub.s32 0, %v2221
    %v2223 = vrot.slane %v2218, %v2222
    %v2241 = vunpack.c.l.b16 %v2202
    %v2242 = vunpack.c.l.b16 %v2203
    %v2243 = vunpack.c.l.b16 %v2204
    %v2244 = vunpack.c.l.b16 %v2205
    %v2245 = vunpack.c.l.b16 %v2206
    %v2246 = vunpack.c.l.b16 %v2207
    %v2247 = vunpack.c.l.b16 %v2208
    %v2248 = vunpack.c.l.b16 %v2209
    %v2249 = vunpack.c.l.b16 %v2210
    %v2250 = vunpack.c.l.b16 %v2211
    %v2251 = vunpack.c.l.b16 %v2212
    %v2252 = vunpack.c.l.b16 %v2213
    %v2253 = vunpack.c.l.b16 %v2214
    %v2254 = vunpack.c.l.b16 %v2215
    %v2255 = vunpack.c.l.b16 %v2216
    %v2256 = vunpack.c.l.b16 %v2217
    %v2257 = vpack.c.b16 %v2242, %v2241
    %v2258 = vpack.c.b16 %v2244, %v2243
    %v2259 = vpack.c.b16 %v2246, %v2245
    %v2260 = vpack.c.b16 %v2248, %v2247
    %v2261 = vpack.c.b16 %v2250, %v2249
    %v2262 = vpack.c.b16 %v2252, %v2251
    %v2263 = vpack.c.b16 %v2254, %v2253
    %v2264 = vpack.c.b16 %v2256, %v2255
    %2273 = vmatprep.subr.bf16.mxu0 0
    %2274 = vmatpush1.bf16.msra.mxu0 %v2264
    %2275 = vmatprep.subr.bf16.mxu0 0
    %2276 = vmatpush1.bf16.msra.mxu0 %v2263
    %2277 = vmatprep.subr.bf16.mxu0 0
    %2278 = vmatpush1.bf16.msra.mxu0 %v2262
    %2279 = vmatprep.subr.bf16.mxu0 0
    %2280 = vmatpush1.bf16.msra.mxu0 %v2261
    %2281 = vmatprep.subr.bf16.mxu0 0
    %2282 = vmatpush1.bf16.msra.mxu0 %v2260
    %2283 = vmatprep.subr.bf16.mxu0 0
    %2284 = vmatpush1.bf16.msra.mxu0 %v2259
    %2285 = vmatprep.subr.bf16.mxu0 0
    %2286 = vmatpush1.bf16.msra.mxu0 %v2258
    %2287 = vmatprep.subr.bf16.mxu0 0
    %2288 = vmatpush1.bf16.msra.mxu0 %v2257
    %2289 = vmatprep.subr.bf16.mxu0 0
    %2290 = vmatpush2.bf16.msra.mxu0 0
    %2291 = vmatprep.subr.bf16.mxu0 0
    %2292 = vmatpush2.bf16.msra.mxu0 0
    %2293 = vmatprep.subr.bf16.mxu0 0
    %2294 = vmatpush2.bf16.msra.mxu0 0
    %2295 = vmatprep.subr.bf16.mxu0 0
    %2296 = vmatpush2.bf16.msra.mxu0 0
    %2297 = vmatprep.subr.bf16.mxu0 0
    %2298 = vmatpush2.bf16.msra.mxu0 0
    %2299 = vmatprep.subr.bf16.mxu0 0
    %2300 = vmatpush2.bf16.msra.mxu0 0
    %2301 = vmatprep.subr.bf16.mxu0 0
    %2302 = vmatpush2.bf16.msra.mxu0 0
    %2303 = vmatprep.subr.bf16.mxu0 0
    %2304 = vmatpush2.bf16.msra.mxu0 0
    %2305 = vmatprep.mubr.bf16.mxu0 0
    %2306 = vmatmul.mubr.bf16.gmra.mxu0 %v2201
    %v2307 = vpop.f32.mrf.mxu0
    %v2308 = vadd.f32 %v2223, %v2307
    %v2309 = vpop.f32.mrf.mxu0
    %v2310 = vpop.f32.mrf.mxu0
    %v2311 = vpop.f32.mrf.mxu0
    %2312 = vdwg.mxu0
    %v2313 = vtanh.pop %v2308
    %2314 = vst [vmem:[#allocation10] sm:$0xff] %v2313
    // Predicated region
    $region46: #{tpu_custom_call.1} parent=1 // pred_check
      _
    $region47: #{tpu_custom_call.1} parent=1 // pred_check_branch
      %2316 = sbr.rel (0) target = $region49
    $region48: #{tpu_custom_call.1} parent=1 // pred_region
      %s2318 = ssub.s32 128, 128
      %2319 = vsyncadd [#allocation4], %s2318
      %s2321 = sshll.u32 [#allocation10], 4
      %s2322 = int_to_ptr.vmem [resolvable:$true] %s2321
      %2324 = dma.vmem_to_hbm [thread:$0]  %s2322, 128, %s7, [#allocation4]
    $region49: #{tpu_custom_call.1} parent=1 // pred_fallthru
      _
    // Predicated region
    $region50: #{tpu_custom_call.1} parent=1 // pred_check
      _
    $region51: #{tpu_custom_call.1} parent=1 // pred_check_branch
      %2326 = sbr.rel (0) target = $region53
    $region52: #{tpu_custom_call.1} parent=1 // pred_region
      %2327 = dma.done [#allocation4], 128
    $region53: #{tpu_custom_call.1} parent=1 // pred_fallthru
      _
    %2328 = vsyncpa [#allocation3], 1
    %2329 = vsyncpa [#allocation6], 1
    %2330 = vsyncpa [#allocation9], 1
    %2331 = vsyncpa [#allocation4], 1

</llo_original>
